<compile_context>
chip_gen: v7x
topology: tpu7x:2x2x1
jax: 0.10.0
libtpu: 0.0.40
codegen_flags: <defaults>
</compile_context>

<pallas_src>
import functools

import jax
import jax.numpy as jnp
from jax.experimental import pallas as pl
from jax.experimental.pallas import tpu as pltpu


# ----------------------------- fused attention kernel -----------------------------
def _attention_kernel(*refs, heads, head_dim, scale, has_qkv_bias):
    """Fused multi-head self-attention for ONE batch element per grid step.

    Refs (has_qkv_bias=False):
      x_ref:     (1, N, C)  bf16 tokens for this batch element
      wqkv_ref:  (C, 3*A)   bf16 qkv weight, x@W layout, columns [q | k | v], head-major
      wproj_ref: (A, C)     bf16 output projection weight, x@W layout
      bproj_ref: (1, C)     f32 output projection bias
      o_ref:     (1, N, C)  f32 output tokens
    With has_qkv_bias=True, a (1, 3*A) f32 bias row is inserted after wqkv_ref
    (layout cat(q_bias, zeros, v_bias), matching the PyTorch module).
    """
    if has_qkv_bias:
        x_ref, wqkv_ref, bqkv_ref, wproj_ref, bproj_ref, o_ref = refs
    else:
        x_ref, wqkv_ref, wproj_ref, bproj_ref, o_ref = refs
        bqkv_ref = None

    A = heads * head_dim

    x = x_ref[0]  # (N, C) bf16
    # Fused QKV projection: one wide, lane-dense MXU matmul (bf16 in, f32 accumulate).
    qkv = jnp.dot(x, wqkv_ref[...], preferred_element_type=jnp.float32)  # (N, 3A) f32
    if bqkv_ref is not None:
        qkv = qkv + bqkv_ref[...]

    ctxs = []
    for h in range(heads):
        lo = h * head_dim
        q = (qkv[:, lo:lo + head_dim] * scale).astype(jnp.bfloat16)        # (N, D)
        k = qkv[:, A + lo:A + lo + head_dim].astype(jnp.bfloat16)          # (N, D)
        v = qkv[:, 2 * A + lo:2 * A + lo + head_dim].astype(jnp.bfloat16)  # (N, D)

        # Scores for this batch only -- no cross-batch work, no mask.
        s = jax.lax.dot_general(q, k, (((1,), (1,)), ((), ())),
                                preferred_element_type=jnp.float32)        # (N, N) f32
        # Softmax elementwise math stays f32 (v5e EUP/VPU have no bf16 path).
        s = s - jnp.max(s, axis=-1, keepdims=True)
        e = jnp.exp(s)
        p = e * pl.reciprocal(jnp.sum(e, axis=-1, keepdims=True), approx=True)

        ctxs.append(jnp.dot(p.astype(jnp.bfloat16), v,
                            preferred_element_type=jnp.float32))           # (N, D) f32

    # Lane-dense (N, A) context kept in vregs -> single full-width output projection.
    ctx = jnp.concatenate(ctxs, axis=-1).astype(jnp.bfloat16)              # (N, A)
    out = jnp.dot(ctx, wproj_ref[...],
                  preferred_element_type=jnp.float32) + bproj_ref[...]     # (N, C) f32
    o_ref[0] = out


# ----------------------------- wrapper ---------------------------------------------
def attention(x, wqkv, wproj, bproj, *, num_heads, bqkv=None):
    """x: (B, N, C); wqkv: (C, 3*A); wproj: (A, C); bproj: (C,); bqkv: optional (3*A,)."""
    B, N, C = x.shape
    A = wproj.shape[0]
    D = A // num_heads
    scale = float(D) ** -0.5
    has_qkv_bias = bqkv is not None

    # bf16 MXU operands (halves weight/activation DMA + VMEM); biases stay f32.
    x_bf = x.astype(jnp.bfloat16)
    wqkv_bf = wqkv.astype(jnp.bfloat16)
    wproj_bf = wproj.astype(jnp.bfloat16)

    kern = functools.partial(_attention_kernel, heads=num_heads, head_dim=D,
                             scale=scale, has_qkv_bias=has_qkv_bias)

    in_specs = [
        pl.BlockSpec((1, N, C), lambda b: (b, 0, 0)),        # per-batch token tile
        pl.BlockSpec((C, 3 * A), lambda b: (0, 0)),          # resident weights
    ]
    args = [x_bf, wqkv_bf]
    if has_qkv_bias:
        in_specs.append(pl.BlockSpec((1, 3 * A), lambda b: (0, 0)))
        args.append(bqkv.reshape(1, 3 * A).astype(jnp.float32))
    in_specs += [
        pl.BlockSpec((A, C), lambda b: (0, 0)),
        pl.BlockSpec((1, C), lambda b: (0, 0)),
    ]
    args += [wproj_bf, bproj.reshape(1, C).astype(jnp.float32)]

    out = pl.pallas_call(
        kern,
        out_shape=jax.ShapeDtypeStruct((B, N, C), jnp.float32),
        grid=(B,),
        in_specs=in_specs,
        out_specs=pl.BlockSpec((1, N, C), lambda b: (b, 0, 0)),
        compiler_params=pltpu.CompilerParams(
            dimension_semantics=("parallel",)),               # v7x: shard batches over 2 TCs
    )(*args)
    return out


# ----------------------------- pure-JAX reference (for checking) -------------------
def attention_ref(x, wqkv, wproj, bproj, *, num_heads, bqkv=None):
    B, N, C = x.shape
    A = wproj.shape[0]
    D = A // num_heads
    qkv = x @ wqkv
    if bqkv is not None:
        qkv = qkv + bqkv
    qkv = qkv.reshape(B, N, 3, num_heads, D).transpose(2, 0, 3, 1, 4)
    q, k, v = qkv[0], qkv[1], qkv[2]                          # (B, H, N, D)
    q = q * (float(D) ** -0.5)
    attn = jax.nn.softmax(q @ jnp.swapaxes(k, -1, -2), axis=-1)
    ctx = (attn @ v).transpose(0, 2, 1, 3).reshape(B, N, A)
    return ctx @ wproj + bproj


# ----------------------------- main -------------------------------------------------
if __name__ == "__main__":
    # Small shapes consistent with Attention(dim=C, num_heads=4): x is (B, N, C).
    B, N, C = 2, 64, 128
    num_heads = 4
    A = C  # all_head_dim == dim (attn_head_dim=None), head_dim = 32

    key = jax.random.PRNGKey(0)
    kx, kqkv, kproj, kb = jax.random.split(key, 4)
    x = jax.random.normal(kx, (B, N, C), dtype=jnp.float32)
    # Weights stored in x @ W layout (transpose of torch nn.Linear .weight).
    wqkv = 0.02 * jax.random.normal(kqkv, (C, 3 * A), dtype=jnp.float32)
    wproj = 0.02 * jax.random.normal(kproj, (A, C), dtype=jnp.float32)
    bproj = 0.01 * jax.random.normal(kb, (C,), dtype=jnp.float32)

    fwd = jax.jit(functools.partial(attention, num_heads=num_heads))
    out = fwd(x, wqkv, wproj, bproj)
    jax.block_until_ready(out)

    assert out.shape == (B, N, C)
    assert out.dtype == jnp.float32

    ref = attention_ref(x, wqkv, wproj, bproj, num_heads=num_heads)
    # Tolerance covers bf16 MXU operands (f32 accumulation) + EUP approx reciprocal.
    err = float(jnp.max(jnp.abs(out - ref)))
    assert jnp.allclose(out, ref, atol=1e-2, rtol=1e-2), f"max abs err {err}"

    print("KERNEL_OK")
</pallas_src>

<mosaic_0001>
module attributes {stable_mosaic.version = 11 : i64} {
  func.func @_attention_kernel(%arg0: i32, %arg1: memref<1x64x128xbf16, #tpu.memory_space<vmem>>, %arg2: memref<128x384xbf16, #tpu.memory_space<vmem>>, %arg3: memref<128x128xbf16, #tpu.memory_space<vmem>>, %arg4: memref<1x128xf32, #tpu.memory_space<vmem>>, %arg5: memref<1x64x128xf32, #tpu.memory_space<vmem>>) attributes {dimension_semantics = [#tpu.dimension_semantics<parallel>], iteration_bounds = array<i64: 2>, scalar_prefetch = 0 : i64, scratch_operands = 0 : i64, tpu.core_type = #tpu.core_type<tc>, window_params = [{transform_indices = @transform_0, window_bounds = array<i64: 1, 64, 128>}, {pipeline_mode = #tpu.pipeline_mode<synchronous>, transform_indices = @transform_1, window_bounds = array<i64: 128, 384>}, {pipeline_mode = #tpu.pipeline_mode<synchronous>, transform_indices = @transform_2, window_bounds = array<i64: 128, 128>}, {pipeline_mode = #tpu.pipeline_mode<synchronous>, transform_indices = @transform_3, window_bounds = array<i64: 1, 128>}, {transform_indices = @transform_4, window_bounds = array<i64: 1, 64, 128>}]} {
    %c0 = arith.constant 0 : index
    %c0_0 = arith.constant 0 : index
    %c0_1 = arith.constant 0 : index
    %0 = vector.load %arg1[%c0, %c0_0, %c0_1] : memref<1x64x128xbf16, #tpu.memory_space<vmem>>, vector<1x64x128xbf16>
    %1 = vector.shape_cast %0 : vector<1x64x128xbf16> to vector<64x128xbf16>
    %c0_2 = arith.constant 0 : index
    %c0_3 = arith.constant 0 : index
    %2 = vector.load %arg2[%c0_2, %c0_3] : memref<128x384xbf16, #tpu.memory_space<vmem>>, vector<128x384xbf16>
    %cst = arith.constant dense<0.000000e+00> : vector<64x384xf32>
    %3 = tpu.matmul %1, %2, %cst {dimension_numbers = #tpu.dot_dimension_numbers<[1], [0], [0], [1], [0, 0, 1, 1], [], []>} : vector<64x128xbf16>, vector<128x384xbf16>, vector<64x384xf32> -> vector<64x384xf32>
    %4 = vector.extract_strided_slice %3 {offsets = [0, 0], sizes = [64, 32], strides = [1, 1]} : vector<64x384xf32> to vector<64x32xf32>
    %cst_4 = arith.constant 0.176776692 : f32
    %5 = vector.broadcast %cst_4 : f32 to vector<64x32xf32>
    %6 = arith.mulf %4, %5 : vector<64x32xf32>
    %7 = arith.truncf %6 : vector<64x32xf32> to vector<64x32xbf16>
    %8 = vector.extract_strided_slice %3 {offsets = [0, 128], sizes = [64, 32], strides = [1, 1]} : vector<64x384xf32> to vector<64x32xf32>
    %9 = arith.truncf %8 : vector<64x32xf32> to vector<64x32xbf16>
    %10 = vector.extract_strided_slice %3 {offsets = [0, 256], sizes = [64, 32], strides = [1, 1]} : vector<64x384xf32> to vector<64x32xf32>
    %11 = arith.truncf %10 : vector<64x32xf32> to vector<64x32xbf16>
    %cst_5 = arith.constant dense<0.000000e+00> : vector<64x64xf32>
    %12 = tpu.matmul %7, %9, %cst_5 {dimension_numbers = #tpu.dot_dimension_numbers<[1], [1], [0], [0], [0, 0, 1, 0], [], []>} : vector<64x32xbf16>, vector<64x32xbf16>, vector<64x64xf32> -> vector<64x64xf32>
    %cst_6 = arith.constant dense<0xFF800000> : vector<64xf32>
    %13 = vector.multi_reduction <maximumf>, %12, %cst_6 [1] : vector<64x64xf32> to vector<64xf32>
    %14 = vector.shape_cast %13 : vector<64xf32> to vector<64x1xf32>
    %15 = vector.broadcast %14 : vector<64x1xf32> to vector<64x64xf32>
    %16 = arith.subf %12, %15 : vector<64x64xf32>
    %17 = math.exp %16 : vector<64x64xf32>
    %cst_7 = arith.constant dense<0.000000e+00> : vector<64xf32>
    %18 = vector.multi_reduction <add>, %17, %cst_7 [1] : vector<64x64xf32> to vector<64xf32>
    %19 = vector.shape_cast %18 : vector<64xf32> to vector<64x1xf32>
    %20 = tpu.reciprocal %19 {approx = true} : vector<64x1xf32> -> vector<64x1xf32>
    %21 = vector.broadcast %20 : vector<64x1xf32> to vector<64x64xf32>
    %22 = arith.mulf %17, %21 : vector<64x64xf32>
    %23 = arith.truncf %22 : vector<64x64xf32> to vector<64x64xbf16>
    %cst_8 = arith.constant dense<0.000000e+00> : vector<64x32xf32>
    %24 = tpu.matmul %23, %11, %cst_8 {dimension_numbers = #tpu.dot_dimension_numbers<[1], [0], [0], [1], [0, 0, 1, 1], [], []>} : vector<64x64xbf16>, vector<64x32xbf16>, vector<64x32xf32> -> vector<64x32xf32>
    %25 = vector.extract_strided_slice %3 {offsets = [0, 32], sizes = [64, 32], strides = [1, 1]} : vector<64x384xf32> to vector<64x32xf32>
    %cst_9 = arith.constant 0.176776692 : f32
    %26 = vector.broadcast %cst_9 : f32 to vector<64x32xf32>
    %27 = arith.mulf %25, %26 : vector<64x32xf32>
    %28 = arith.truncf %27 : vector<64x32xf32> to vector<64x32xbf16>
    %29 = vector.extract_strided_slice %3 {offsets = [0, 160], sizes = [64, 32], strides = [1, 1]} : vector<64x384xf32> to vector<64x32xf32>
    %30 = arith.truncf %29 : vector<64x32xf32> to vector<64x32xbf16>
    %31 = vector.extract_strided_slice %3 {offsets = [0, 288], sizes = [64, 32], strides = [1, 1]} : vector<64x384xf32> to vector<64x32xf32>
    %32 = arith.truncf %31 : vector<64x32xf32> to vector<64x32xbf16>
    %cst_10 = arith.constant dense<0.000000e+00> : vector<64x64xf32>
    %33 = tpu.matmul %28, %30, %cst_10 {dimension_numbers = #tpu.dot_dimension_numbers<[1], [1], [0], [0], [0, 0, 1, 0], [], []>} : vector<64x32xbf16>, vector<64x32xbf16>, vector<64x64xf32> -> vector<64x64xf32>
    %cst_11 = arith.constant dense<0xFF800000> : vector<64xf32>
    %34 = vector.multi_reduction <maximumf>, %33, %cst_11 [1] : vector<64x64xf32> to vector<64xf32>
    %35 = vector.shape_cast %34 : vector<64xf32> to vector<64x1xf32>
    %36 = vector.broadcast %35 : vector<64x1xf32> to vector<64x64xf32>
    %37 = arith.subf %33, %36 : vector<64x64xf32>
    %38 = math.exp %37 : vector<64x64xf32>
    %cst_12 = arith.constant dense<0.000000e+00> : vector<64xf32>
    %39 = vector.multi_reduction <add>, %38, %cst_12 [1] : vector<64x64xf32> to vector<64xf32>
    %40 = vector.shape_cast %39 : vector<64xf32> to vector<64x1xf32>
    %41 = tpu.reciprocal %40 {approx = true} : vector<64x1xf32> -> vector<64x1xf32>
    %42 = vector.broadcast %41 : vector<64x1xf32> to vector<64x64xf32>
    %43 = arith.mulf %38, %42 : vector<64x64xf32>
    %44 = arith.truncf %43 : vector<64x64xf32> to vector<64x64xbf16>
    %cst_13 = arith.constant dense<0.000000e+00> : vector<64x32xf32>
    %45 = tpu.matmul %44, %32, %cst_13 {dimension_numbers = #tpu.dot_dimension_numbers<[1], [0], [0], [1], [0, 0, 1, 1], [], []>} : vector<64x64xbf16>, vector<64x32xbf16>, vector<64x32xf32> -> vector<64x32xf32>
    %46 = vector.extract_strided_slice %3 {offsets = [0, 64], sizes = [64, 32], strides = [1, 1]} : vector<64x384xf32> to vector<64x32xf32>
    %cst_14 = arith.constant 0.176776692 : f32
    %47 = vector.broadcast %cst_14 : f32 to vector<64x32xf32>
    %48 = arith.mulf %46, %47 : vector<64x32xf32>
    %49 = arith.truncf %48 : vector<64x32xf32> to vector<64x32xbf16>
    %50 = vector.extract_strided_slice %3 {offsets = [0, 192], sizes = [64, 32], strides = [1, 1]} : vector<64x384xf32> to vector<64x32xf32>
    %51 = arith.truncf %50 : vector<64x32xf32> to vector<64x32xbf16>
    %52 = vector.extract_strided_slice %3 {offsets = [0, 320], sizes = [64, 32], strides = [1, 1]} : vector<64x384xf32> to vector<64x32xf32>
    %53 = arith.truncf %52 : vector<64x32xf32> to vector<64x32xbf16>
    %cst_15 = arith.constant dense<0.000000e+00> : vector<64x64xf32>
    %54 = tpu.matmul %49, %51, %cst_15 {dimension_numbers = #tpu.dot_dimension_numbers<[1], [1], [0], [0], [0, 0, 1, 0], [], []>} : vector<64x32xbf16>, vector<64x32xbf16>, vector<64x64xf32> -> vector<64x64xf32>
    %cst_16 = arith.constant dense<0xFF800000> : vector<64xf32>
    %55 = vector.multi_reduction <maximumf>, %54, %cst_16 [1] : vector<64x64xf32> to vector<64xf32>
    %56 = vector.shape_cast %55 : vector<64xf32> to vector<64x1xf32>
    %57 = vector.broadcast %56 : vector<64x1xf32> to vector<64x64xf32>
    %58 = arith.subf %54, %57 : vector<64x64xf32>
    %59 = math.exp %58 : vector<64x64xf32>
    %cst_17 = arith.constant dense<0.000000e+00> : vector<64xf32>
    %60 = vector.multi_reduction <add>, %59, %cst_17 [1] : vector<64x64xf32> to vector<64xf32>
    %61 = vector.shape_cast %60 : vector<64xf32> to vector<64x1xf32>
    %62 = tpu.reciprocal %61 {approx = true} : vector<64x1xf32> -> vector<64x1xf32>
    %63 = vector.broadcast %62 : vector<64x1xf32> to vector<64x64xf32>
    %64 = arith.mulf %59, %63 : vector<64x64xf32>
    %65 = arith.truncf %64 : vector<64x64xf32> to vector<64x64xbf16>
    %cst_18 = arith.constant dense<0.000000e+00> : vector<64x32xf32>
    %66 = tpu.matmul %65, %53, %cst_18 {dimension_numbers = #tpu.dot_dimension_numbers<[1], [0], [0], [1], [0, 0, 1, 1], [], []>} : vector<64x64xbf16>, vector<64x32xbf16>, vector<64x32xf32> -> vector<64x32xf32>
    %67 = vector.extract_strided_slice %3 {offsets = [0, 96], sizes = [64, 32], strides = [1, 1]} : vector<64x384xf32> to vector<64x32xf32>
    %cst_19 = arith.constant 0.176776692 : f32
    %68 = vector.broadcast %cst_19 : f32 to vector<64x32xf32>
    %69 = arith.mulf %67, %68 : vector<64x32xf32>
    %70 = arith.truncf %69 : vector<64x32xf32> to vector<64x32xbf16>
    %71 = vector.extract_strided_slice %3 {offsets = [0, 224], sizes = [64, 32], strides = [1, 1]} : vector<64x384xf32> to vector<64x32xf32>
    %72 = arith.truncf %71 : vector<64x32xf32> to vector<64x32xbf16>
    %73 = vector.extract_strided_slice %3 {offsets = [0, 352], sizes = [64, 32], strides = [1, 1]} : vector<64x384xf32> to vector<64x32xf32>
    %74 = arith.truncf %73 : vector<64x32xf32> to vector<64x32xbf16>
    %cst_20 = arith.constant dense<0.000000e+00> : vector<64x64xf32>
    %75 = tpu.matmul %70, %72, %cst_20 {dimension_numbers = #tpu.dot_dimension_numbers<[1], [1], [0], [0], [0, 0, 1, 0], [], []>} : vector<64x32xbf16>, vector<64x32xbf16>, vector<64x64xf32> -> vector<64x64xf32>
    %cst_21 = arith.constant dense<0xFF800000> : vector<64xf32>
    %76 = vector.multi_reduction <maximumf>, %75, %cst_21 [1] : vector<64x64xf32> to vector<64xf32>
    %77 = vector.shape_cast %76 : vector<64xf32> to vector<64x1xf32>
    %78 = vector.broadcast %77 : vector<64x1xf32> to vector<64x64xf32>
    %79 = arith.subf %75, %78 : vector<64x64xf32>
    %80 = math.exp %79 : vector<64x64xf32>
    %cst_22 = arith.constant dense<0.000000e+00> : vector<64xf32>
    %81 = vector.multi_reduction <add>, %80, %cst_22 [1] : vector<64x64xf32> to vector<64xf32>
    %82 = vector.shape_cast %81 : vector<64xf32> to vector<64x1xf32>
    %83 = tpu.reciprocal %82 {approx = true} : vector<64x1xf32> -> vector<64x1xf32>
    %84 = vector.broadcast %83 : vector<64x1xf32> to vector<64x64xf32>
    %85 = arith.mulf %80, %84 : vector<64x64xf32>
    %86 = arith.truncf %85 : vector<64x64xf32> to vector<64x64xbf16>
    %cst_23 = arith.constant dense<0.000000e+00> : vector<64x32xf32>
    %87 = tpu.matmul %86, %74, %cst_23 {dimension_numbers = #tpu.dot_dimension_numbers<[1], [0], [0], [1], [0, 0, 1, 1], [], []>} : vector<64x64xbf16>, vector<64x32xbf16>, vector<64x32xf32> -> vector<64x32xf32>
    %88 = tpu.concatenate %24, %45, %66, %87 in 1 : vector<64x32xf32>, vector<64x32xf32>, vector<64x32xf32>, vector<64x32xf32> -> vector<64x128xf32>
    %89 = arith.truncf %88 : vector<64x128xf32> to vector<64x128xbf16>
    %c0_24 = arith.constant 0 : index
    %c0_25 = arith.constant 0 : index
    %90 = vector.load %arg3[%c0_24, %c0_25] : memref<128x128xbf16, #tpu.memory_space<vmem>>, vector<128x128xbf16>
    %cst_26 = arith.constant dense<0.000000e+00> : vector<64x128xf32>
    %91 = tpu.matmul %89, %90, %cst_26 {dimension_numbers = #tpu.dot_dimension_numbers<[1], [0], [0], [1], [0, 0, 1, 1], [], []>} : vector<64x128xbf16>, vector<128x128xbf16>, vector<64x128xf32> -> vector<64x128xf32>
    %c0_27 = arith.constant 0 : index
    %c0_28 = arith.constant 0 : index
    %92 = vector.load %arg4[%c0_27, %c0_28] : memref<1x128xf32, #tpu.memory_space<vmem>>, vector<1x128xf32>
    %93 = vector.broadcast %92 : vector<1x128xf32> to vector<64x128xf32>
    %94 = arith.addf %91, %93 : vector<64x128xf32>
    %c0_29 = arith.constant 0 : index
    %c0_30 = arith.constant 0 : index
    %c0_31 = arith.constant 0 : index
    %95 = vector.load %arg5[%c0_29, %c0_30, %c0_31] : memref<1x64x128xf32, #tpu.memory_space<vmem>>, vector<1x64x128xf32>
    %96 = vector.shape_cast %95 : vector<1x64x128xf32> to vector<64x128xf32>
    %97 = vector.shape_cast %94 : vector<64x128xf32> to vector<1x64x128xf32>
    tpu.vector_store %arg5[%c0_29, %c0_30, %c0_31], %97 {strides = array<i32>} : memref<1x64x128xf32, #tpu.memory_space<vmem>>, vector<1x64x128xf32>,
    return
  }
  func.func @transform_0(%arg0: i32) -> (i32, i32, i32) {
    %c0_i32 = arith.constant 0 : i32
    %c0_i32_0 = arith.constant 0 : i32
    %c0_i32_1 = arith.constant 0 : i32
    return %arg0, %c0_i32, %c0_i32_0 : i32, i32, i32
  }
  func.func @transform_1(%arg0: i32) -> (i32, i32) {
    %c0_i32 = arith.constant 0 : i32
    %c0_i32_0 = arith.constant 0 : i32
    %c0_i32_1 = arith.constant 0 : i32
    return %c0_i32, %c0_i32_0 : i32, i32
  }
  func.func @transform_2(%arg0: i32) -> (i32, i32) {
    %c0_i32 = arith.constant 0 : i32
    %c0_i32_0 = arith.constant 0 : i32
    %c0_i32_1 = arith.constant 0 : i32
    return %c0_i32, %c0_i32_0 : i32, i32
  }
  func.func @transform_3(%arg0: i32) -> (i32, i32) {
    %c0_i32 = arith.constant 0 : i32
    %c0_i32_0 = arith.constant 0 : i32
    %c0_i32_1 = arith.constant 0 : i32
    return %c0_i32, %c0_i32_0 : i32, i32
  }
  func.func @transform_4(%arg0: i32) -> (i32, i32, i32) {
    %c0_i32 = arith.constant 0 : i32
    %c0_i32_0 = arith.constant 0 : i32
    %c0_i32_1 = arith.constant 0 : i32
    return %arg0, %c0_i32, %c0_i32_0 : i32, i32, i32
  }
}

</mosaic_0001>

<llo_original>
// kernel: attention.1
$region0: #{attention.1}
  #allocation0 [shape = 'u32[]', space=smem, size = 0x4, offset = 0x4, fixed_abs, tag = 'smem constant byte address 0x4 - core index']
  #allocation1 [shape = 'u32[144,128]{1,0:T(1,128)}', space=vmem, size = 0x12000, scoped, tag = 'internal scratch']
  %s0 = inlined_call_operand.vmem [shape: bf16[2,64,128], index: 0, kind: input, shape index: {}]
  %s1 = inlined_call_operand.vmem [shape: bf16[128,384], index: 1, kind: input, shape index: {}]
  %s2 = inlined_call_operand.vmem [shape: bf16[128,128], index: 2, kind: input, shape index: {}]
  %s3 = inlined_call_operand.vmem [shape: f32[1,128], index: 3, kind: input, shape index: {}]
  %s4 = inlined_call_operand.hbm [shape: f32[2,64,128], index: 4, kind: output, shape index: {}]
  %s5 = sld [smem:[#allocation0]]
  $region49: #{attention.1} parent=0
    _
  %s7 = ssub.s32 1, %s5
  %s8 = scalar_select 0, %s7, %s5
  $region1: #{attention.1} parent=0
    #allocation2 [shape = 'u8[65536]{0}', space=vmem, size = 0x10000, scoped, tag = 'output window, operand 0']
    #allocation3 [shape = 's32[2]{0}', space=sflag, size = 0x8, scoped, tag = 'scoped memory for attention.1']
    %9 = vsyncpa [#allocation3], 0
    %s10 = scalar_lea.sflag [#allocation3], 1
    %11 = vsyncpa %s10, 0
    loop: start=0, step=1, limit=4
    $region2: #{attention.1} parent=1 // loop_pre_header
      _
    $region3: #{attention.1} parent=1 // loop_header
      %s13 = sphi 0, %s17
      %p14 = scmp.ge.s32.totalorder %s13, 4
      %s23 = sphi 0, %s25
      %s26 = sphi 0, %s23
      %s27 = sphi 0, %s26
      %s43 = sphi 0, %s27
      %s47 = sphi 0, %s47
      %s49 = sphi 0, %s47
      %s50 = sphi 0, %s49
      %s64 = sphi 0, %s50
      %s68 = sphi 0, %s68
      %s70 = sphi 0, %s68
      %s71 = sphi 0, %s70
      %s85 = sphi 0, %s71
      %s89 = sphi 0, %s89
      %s91 = sphi 0, %s89
      %s92 = sphi 0, %s91
      %s106 = sphi 0, %s92
      %s112 = sphi 0, %s114
      %s115 = sphi 0, %s112
      %s116 = sphi 0, %s115
      %s132 = sphi 0, %s116
    $region4: #{attention.1} parent=1 // loop_header_branch
      %16 = sbr.rel (%p14) target = $region8
    $region5: #{attention.1} parent=1 // loop_body
      %s18 = ssub.s32 %s13, 1
      %s19 = ssub.s32 %s13, 2
      %s20 = sadd.s32 %s13, 1
      %s21 = ssub.s32 %s13, %s20
      %p22 = scmp.eq.s32.totalorder %s21, 0
      %s24 = sadd.s32 %s23, 1
      %s25 = scalar_select %p22, %s23, %s24
      %p28 = pneg %p22
      %p29 = scmp.eq.s32.totalorder %s13, 1
      %p30 = por %p28, %p29
      %p31 = scmp.ne.s32.totalorder %s23, %s26
      %p32 = scmp.eq.s32.totalorder %s13, 0
      %p33 = por %p31, %p32
      %p34 = scmp.ne.s32.totalorder %s23, %s26
      %p35 = scmp.eq.s32.totalorder %s18, 1
      %p36 = por %p34, %p35
      %p37 = scmp.ne.s32.totalorder %s26, %s27
      %p38 = scmp.eq.s32.totalorder %s18, 0
      %p39 = por %p37, %p38
      %p40 = scmp.ne.s32.totalorder %s26, %s27
      %p41 = scmp.eq.s32.totalorder %s19, 1
      %p42 = por %p40, %p41
      %p44 = scmp.ne.s32.totalorder %s27, %s43
      %p45 = scmp.eq.s32.totalorder %s19, 0
      %p46 = por %p44, %p45
      %s48 = sadd.s32 %s47, 1
      %p51 = scmp.eq.s32.totalorder %s13, 1
      %p52 = scmp.ne.s32.totalorder %s47, %s49
      %p53 = scmp.eq.s32.totalorder %s13, 0
      %p54 = por %p52, %p53
      %p55 = scmp.ne.s32.totalorder %s47, %s49
      %p56 = scmp.eq.s32.totalorder %s18, 1
      %p57 = por %p55, %p56
      %p58 = scmp.ne.s32.totalorder %s49, %s50
      %p59 = scmp.eq.s32.totalorder %s18, 0
      %p60 = por %p58, %p59
      %p61 = scmp.ne.s32.totalorder %s49, %s50
      %p62 = scmp.eq.s32.totalorder %s19, 1
      %p63 = por %p61, %p62
      %p65 = scmp.ne.s32.totalorder %s50, %s64
      %p66 = scmp.eq.s32.totalorder %s19, 0
      %p67 = por %p65, %p66
      %s69 = sadd.s32 %s68, 1
      %p72 = scmp.eq.s32.totalorder %s13, 1
      %p73 = scmp.ne.s32.totalorder %s68, %s70
      %p74 = scmp.eq.s32.totalorder %s13, 0
      %p75 = por %p73, %p74
      %p76 = scmp.ne.s32.totalorder %s68, %s70
      %p77 = scmp.eq.s32.totalorder %s18, 1
      %p78 = por %p76, %p77
      %p79 = scmp.ne.s32.totalorder %s70, %s71
      %p80 = scmp.eq.s32.totalorder %s18, 0
      %p81 = por %p79, %p80
      %p82 = scmp.ne.s32.totalorder %s70, %s71
      %p83 = scmp.eq.s32.totalorder %s19, 1
      %p84 = por %p82, %p83
      %p86 = scmp.ne.s32.totalorder %s71, %s85
      %p87 = scmp.eq.s32.totalorder %s19, 0
      %p88 = por %p86, %p87
      %s90 = sadd.s32 %s89, 1
      %p93 = scmp.eq.s32.totalorder %s13, 1
      %p94 = scmp.ne.s32.totalorder %s89, %s91
      %p95 = scmp.eq.s32.totalorder %s13, 0
      %p96 = por %p94, %p95
      %p97 = scmp.ne.s32.totalorder %s89, %s91
      %p98 = scmp.eq.s32.totalorder %s18, 1
      %p99 = por %p97, %p98
      %p100 = scmp.ne.s32.totalorder %s91, %s92
      %p101 = scmp.eq.s32.totalorder %s18, 0
      %p102 = por %p100, %p101
      %p103 = scmp.ne.s32.totalorder %s91, %s92
      %p104 = scmp.eq.s32.totalorder %s19, 1
      %p105 = por %p103, %p104
      %p107 = scmp.ne.s32.totalorder %s92, %s106
      %p108 = scmp.eq.s32.totalorder %s19, 0
      %p109 = por %p107, %p108
      %s110 = ssub.s32 %s13, %s20
      %p111 = scmp.eq.s32.totalorder %s110, 0
      %s113 = sadd.s32 %s112, 1
      %s114 = scalar_select %p111, %s112, %s113
      %p117 = pneg %p111
      %p118 = scmp.eq.s32.totalorder %s13, 1
      %p119 = por %p117, %p118
      %p120 = scmp.ne.s32.totalorder %s112, %s115
      %p121 = scmp.eq.s32.totalorder %s13, 0
      %p122 = por %p120, %p121
      %p123 = scmp.ne.s32.totalorder %s112, %s115
      %p124 = scmp.eq.s32.totalorder %s18, 1
      %p125 = por %p123, %p124
      %p126 = scmp.ne.s32.totalorder %s115, %s116
      %p127 = scmp.eq.s32.totalorder %s18, 0
      %p128 = por %p126, %p127
      %p129 = scmp.ne.s32.totalorder %s115, %s116
      %p130 = scmp.eq.s32.totalorder %s19, 1
      %p131 = por %p129, %p130
      %p133 = scmp.ne.s32.totalorder %s116, %s132
      %p134 = scmp.eq.s32.totalorder %s19, 0
      %p135 = por %p133, %p134
      %p136 = scmp.le.s32.totalorder 1, %s13
      %p137 = scmp.lt.s32.totalorder %s13, 3
      %p138 = pnand %p136, %p137
      %p139 = pneg %p138
      // Predicated region
      $region9: #{attention.1} parent=5 // pred_check
        _
      $region10: #{attention.1} parent=5 // pred_check_branch
        %141 = sbr.rel (%p138) target = $region12
      $region11: #{attention.1} parent=5 // pred_region
        %s142 = ssub.s32 %s13, 1
        // Predicated region
        $region13: #{attention.1} parent=11 // pred_check
          %p143 = pneg %p60
        $region14: #{attention.1} parent=11 // pred_check_branch
          %145 = sbr.rel (%p143) target = $region16
        $region15: #{attention.1} parent=11 // pred_region
          _
        $region16: #{attention.1} parent=11 // pred_fallthru
          _
        // Predicated region
        $region17: #{attention.1} parent=11 // pred_check
          %p146 = pneg %p81
        $region18: #{attention.1} parent=11 // pred_check_branch
          %148 = sbr.rel (%p146) target = $region20
        $region19: #{attention.1} parent=11 // pred_region
          _
        $region20: #{attention.1} parent=11 // pred_fallthru
          _
        // Predicated region
        $region21: #{attention.1} parent=11 // pred_check
          %p149 = pneg %p102
        $region22: #{attention.1} parent=11 // pred_check_branch
          %151 = sbr.rel (%p149) target = $region24
        $region23: #{attention.1} parent=11 // pred_region
          _
        $region24: #{attention.1} parent=11 // pred_fallthru
          _
      $region12: #{attention.1} parent=5 // pred_fallthru
        _
      %p152 = scmp.lt.s32.totalorder %s13, 2
      // Predicated region
      $region25: #{attention.1} parent=5 // pred_check
        %p153 = pneg %p152
      $region26: #{attention.1} parent=5 // pred_check_branch
        %155 = sbr.rel (%p153) target = $region28
      $region27: #{attention.1} parent=5 // pred_region
        // Predicated region
        $region29: #{attention.1} parent=27 // pred_check
          %p156 = pneg %p33
        $region30: #{attention.1} parent=27 // pred_check_branch
          %158 = sbr.rel (%p156) target = $region32
        $region31: #{attention.1} parent=27 // pred_region
          %p159 = scmp.lt.s32.totalorder %s13, 1
          %s160 = scalar_select %p159, %s13, 1
          %s161 = smul.addr %s160, 8
          %s162 = smul.addr %s161, 4
          %s163 = scalar_lea.vmem %s0, %s162
        $region32: #{attention.1} parent=27 // pred_fallthru
          _
      $region28: #{attention.1} parent=5 // pred_fallthru
        _
      %p164 = scmp.le.s32.totalorder 1, %s13
      %p165 = scmp.lt.s32.totalorder %s13, 3
      %p166 = pnand %p164, %p165
      %p167 = pneg %p166
      // Predicated region
      $region33: #{attention.1} parent=5 // pred_check
        _
      $region34: #{attention.1} parent=5 // pred_check_branch
        %169 = sbr.rel (%p166) target = $region36
      $region35: #{attention.1} parent=5 // pred_region
        %s170 = ssub.s32 %s13, 1
        %p171 = scmp.lt.s32.totalorder %s18, 1
        %s172 = scalar_select %p171, %s18, 1
        %s173 = smul.addr %s172, 8
        %s174 = smul.addr %s173, 4
        %s175 = scalar_lea.vmem %s0, %s174
        %p176 = pneg %p39
        %p177 = pneg %p36
        %p178 = pneg %p60
        %p179 = pneg %p57
        %p180 = pneg %p81
        %p181 = pneg %p78
        %p182 = pneg %p102
        %p183 = pneg %p99
        %p184 = pneg %p128
        %p185 = pneg %p125
        %s186 = sand.u32 %s115, 1
        %s187 = scalar_lea.sflag [#allocation3], %s186
        %s188 = sand.u32 %s115, 1
        %s189 = smul.addr %s188, 64
        %s190 = scalar_lea.vmem [#allocation2], %s189
        %p191 = scmp.lt.s32.totalorder %s18, 1
        %s192 = scalar_select %p191, %s18, 1
        %s193 = smul.addr %s192, 8
        %s194 = smul.addr %s193, 4
        %s195 = scalar_lea.vmem %s0, %s194
        %v197 = vld [vmem:[%s195] sm:$0xf]
        %v198 = vld [vmem:[%s195 + $0x4] sm:$0xf]
        %v199 = vld [vmem:[%s195 + $0x8] sm:$0xf]
        %v200 = vld [vmem:[%s195 + $0xc] sm:$0xf]
        %v201 = vld [vmem:[%s195 + $0x10] sm:$0xf]
        %v202 = vld [vmem:[%s195 + $0x14] sm:$0xf]
        %v203 = vld [vmem:[%s195 + $0x18] sm:$0xf]
        %v204 = vld [vmem:[%s195 + $0x1c] sm:$0xf]
        %v205 = vld [vmem:[%s1] sm:$0xff]
        %v206 = vld [vmem:[%s1 + $0x8] sm:$0xf]
        %v207 = vld [vmem:[%s1 + $0xc] sm:$0xff]
        %v208 = vld [vmem:[%s1 + $0x14] sm:$0xf]
        %v209 = vld [vmem:[%s1 + $0x18] sm:$0xff]
        %v210 = vld [vmem:[%s1 + $0x20] sm:$0xf]
        %v211 = vld [vmem:[%s1 + $0x24] sm:$0xff]
        %v212 = vld [vmem:[%s1 + $0x2c] sm:$0xf]
        %v213 = vld [vmem:[%s1 + $0x30] sm:$0xff]
        %v214 = vld [vmem:[%s1 + $0x38] sm:$0xf]
        %v215 = vld [vmem:[%s1 + $0x3c] sm:$0xff]
        %v216 = vld [vmem:[%s1 + $0x44] sm:$0xf]
        %v217 = vld [vmem:[%s1 + $0x48] sm:$0xff]
        %v218 = vld [vmem:[%s1 + $0x50] sm:$0xf]
        %v219 = vld [vmem:[%s1 + $0x54] sm:$0xff]
        %v220 = vld [vmem:[%s1 + $0x5c] sm:$0xf]
        %v221 = vld [vmem:[%s1 + $0x60] sm:$0xff]
        %v222 = vld [vmem:[%s1 + $0x68] sm:$0xf]
        %v223 = vld [vmem:[%s1 + $0x6c] sm:$0xff]
        %v224 = vld [vmem:[%s1 + $0x74] sm:$0xf]
        %v225 = vld [vmem:[%s1 + $0x78] sm:$0xff]
        %v226 = vld [vmem:[%s1 + $0x80] sm:$0xf]
        %v227 = vld [vmem:[%s1 + $0x84] sm:$0xff]
        %v228 = vld [vmem:[%s1 + $0x8c] sm:$0xf]
        %v229 = vld [vmem:[%s1 + $0x90] sm:$0xff]
        %v230 = vld [vmem:[%s1 + $0x98] sm:$0xf]
        %v231 = vld [vmem:[%s1 + $0x9c] sm:$0xff]
        %v232 = vld [vmem:[%s1 + $0xa4] sm:$0xf]
        %v233 = vld [vmem:[%s1 + $0xa8] sm:$0xff]
        %v234 = vld [vmem:[%s1 + $0xb0] sm:$0xf]
        %v235 = vld [vmem:[%s1 + $0xb4] sm:$0xff]
        %v236 = vld [vmem:[%s1 + $0xbc] sm:$0xf]
        %v245 = vunpack.c.l.b16 %v197
        %v246 = vunpack.c.l.b16 %v198
        %v247 = vunpack.c.l.b16 %v199
        %v248 = vunpack.c.l.b16 %v200
        %v249 = vunpack.c.l.b16 %v201
        %v250 = vunpack.c.l.b16 %v202
        %v251 = vunpack.c.l.b16 %v203
        %v252 = vunpack.c.l.b16 %v204
        %v253 = vpack.c.b16 %v246, %v245
        %v254 = vpack.c.b16 %v248, %v247
        %v255 = vpack.c.b16 %v250, %v249
        %v256 = vpack.c.b16 %v252, %v251
        %v293 = vunpack.c.l.b16 %v205
        %v294 = vunpack.c.h.b16 %v205
        %v295 = vunpack.c.l.b16 %v206
        %v296 = vunpack.c.l.b16 %v207
        %v297 = vunpack.c.h.b16 %v207
        %v298 = vunpack.c.l.b16 %v208
        %v299 = vunpack.c.l.b16 %v209
        %v300 = vunpack.c.h.b16 %v209
        %v301 = vunpack.c.l.b16 %v210
        %v302 = vunpack.c.l.b16 %v211
        %v303 = vunpack.c.h.b16 %v211
        %v304 = vunpack.c.l.b16 %v212
        %v305 = vunpack.c.l.b16 %v213
        %v306 = vunpack.c.h.b16 %v213
        %v307 = vunpack.c.l.b16 %v214
        %v308 = vunpack.c.l.b16 %v215
        %v309 = vunpack.c.h.b16 %v215
        %v310 = vunpack.c.l.b16 %v216
        %v311 = vunpack.c.l.b16 %v217
        %v312 = vunpack.c.h.b16 %v217
        %v313 = vunpack.c.l.b16 %v218
        %v314 = vunpack.c.l.b16 %v219
        %v315 = vunpack.c.h.b16 %v219
        %v316 = vunpack.c.l.b16 %v220
        %v317 = vunpack.c.l.b16 %v221
        %v318 = vunpack.c.h.b16 %v221
        %v319 = vunpack.c.l.b16 %v222
        %v320 = vunpack.c.l.b16 %v223
        %v321 = vunpack.c.h.b16 %v223
        %v322 = vunpack.c.l.b16 %v224
        %v323 = vunpack.c.l.b16 %v225
        %v324 = vunpack.c.h.b16 %v225
        %v325 = vunpack.c.l.b16 %v226
        %v326 = vunpack.c.l.b16 %v227
        %v327 = vunpack.c.h.b16 %v227
        %v328 = vunpack.c.l.b16 %v228
        %v329 = vunpack.c.l.b16 %v229
        %v330 = vunpack.c.h.b16 %v229
        %v331 = vunpack.c.l.b16 %v230
        %v332 = vunpack.c.l.b16 %v231
        %v333 = vunpack.c.h.b16 %v231
        %v334 = vunpack.c.l.b16 %v232
        %v335 = vunpack.c.l.b16 %v233
        %v336 = vunpack.c.h.b16 %v233
        %v337 = vunpack.c.l.b16 %v234
        %v338 = vunpack.c.l.b16 %v235
        %v339 = vunpack.c.h.b16 %v235
        %v340 = vunpack.c.l.b16 %v236
        %v341 = vpack.c.b16 %v296, %v293
        %v342 = vpack.c.b16 %v297, %v294
        %v343 = vpack.c.b16 %v298, %v295
        %v344 = vpack.c.b16 %v302, %v299
        %v345 = vpack.c.b16 %v303, %v300
        %v346 = vpack.c.b16 %v304, %v301
        %v347 = vpack.c.b16 %v308, %v305
        %v348 = vpack.c.b16 %v309, %v306
        %v349 = vpack.c.b16 %v310, %v307
        %v350 = vpack.c.b16 %v314, %v311
        %v351 = vpack.c.b16 %v315, %v312
        %v352 = vpack.c.b16 %v316, %v313
        %v353 = vpack.c.b16 %v320, %v317
        %v354 = vpack.c.b16 %v321, %v318
        %v355 = vpack.c.b16 %v322, %v319
        %v356 = vpack.c.b16 %v326, %v323
        %v357 = vpack.c.b16 %v327, %v324
        %v358 = vpack.c.b16 %v328, %v325
        %v359 = vpack.c.b16 %v332, %v329
        %v360 = vpack.c.b16 %v333, %v330
        %v361 = vpack.c.b16 %v334, %v331
        %v362 = vpack.c.b16 %v338, %v335
        %v363 = vpack.c.b16 %v339, %v336
        %v364 = vpack.c.b16 %v340, %v337
        %389 = vmatprep.subr.bf16.mxu0 %v342
        %390 = vmatpush1.bf16.msra.mxu0 %v341
        %391 = vmatprep.subr.bf16.mxu0 %v345
        %392 = vmatpush1.bf16.msra.mxu0 %v344
        %393 = vmatprep.subr.bf16.mxu0 %v348
        %394 = vmatpush1.bf16.msra.mxu0 %v347
        %395 = vmatprep.subr.bf16.mxu0 %v351
        %396 = vmatpush1.bf16.msra.mxu0 %v350
        %397 = vmatprep.subr.bf16.mxu0 %v354
        %398 = vmatpush1.bf16.msra.mxu0 %v353
        %399 = vmatprep.subr.bf16.mxu0 %v357
        %400 = vmatpush1.bf16.msra.mxu0 %v356
        %401 = vmatprep.subr.bf16.mxu0 %v360
        %402 = vmatpush1.bf16.msra.mxu0 %v359
        %403 = vmatprep.subr.bf16.mxu0 %v363
        %404 = vmatpush1.bf16.msra.mxu0 %v362
        %405 = vmatprep.subr.bf16.mxu0 0
        %406 = vmatpush1.bf16.msra.mxu0 0
        %407 = vmatprep.subr.bf16.mxu0 0
        %408 = vmatpush1.bf16.msra.mxu0 0
        %409 = vmatprep.subr.bf16.mxu0 0
        %410 = vmatpush1.bf16.msra.mxu0 0
        %411 = vmatprep.subr.bf16.mxu0 0
        %412 = vmatpush1.bf16.msra.mxu0 0
        %413 = vmatprep.subr.bf16.mxu0 0
        %414 = vmatpush1.bf16.msra.mxu0 0
        %415 = vmatprep.subr.bf16.mxu0 0
        %416 = vmatpush1.bf16.msra.mxu0 0
        %417 = vmatprep.subr.bf16.mxu0 0
        %418 = vmatpush1.bf16.msra.mxu0 0
        %419 = vmatprep.subr.bf16.mxu0 0
        %420 = vmatpush1.bf16.msra.mxu0 0
        %421 = vmatprep.mubr.bf16.mxu0 0
        %422 = vmatmul.mubr.bf16.gmra.mrb[0].mxu0 %v253
        %v423 = vpop.f32.mrb[0].mxu0
        %v424 = vadd.f32 0.0, %v423
        %v425 = vpop.f32.mrb[0].mxu0
        %v426 = vadd.f32 0.0, %v425
        %v427 = vpop.f32.mrb[0].mxu0
        %v428 = vadd.f32 0.0, %v427
        %v429 = vpop.f32.mrb[0].mxu0
        %v430 = vadd.f32 0.0, %v429
        %431 = vmatprep.mubr.bf16.mxu0 0
        %432 = vmatmul.mubr.bf16.gmra.mrb[0].mxu0 %v254
        %v433 = vpop.f32.mrb[0].mxu0
        %v434 = vadd.f32 0.0, %v433
        %v435 = vpop.f32.mrb[0].mxu0
        %v436 = vadd.f32 0.0, %v435
        %v437 = vpop.f32.mrb[0].mxu0
        %v438 = vadd.f32 0.0, %v437
        %v439 = vpop.f32.mrb[0].mxu0
        %v440 = vadd.f32 0.0, %v439
        %441 = vmatprep.mubr.bf16.mxu0 0
        %442 = vmatmul.mubr.bf16.gmra.mrb[0].mxu0 %v255
        %v443 = vpop.f32.mrb[0].mxu0
        %v444 = vadd.f32 0.0, %v443
        %v445 = vpop.f32.mrb[0].mxu0
        %v446 = vadd.f32 0.0, %v445
        %v447 = vpop.f32.mrb[0].mxu0
        %v448 = vadd.f32 0.0, %v447
        %v449 = vpop.f32.mrb[0].mxu0
        %v450 = vadd.f32 0.0, %v449
        %451 = vmatprep.mubr.bf16.mxu0 0
        %452 = vmatmul.mubr.bf16.gmra.mrb[0].mxu0 %v256
        %v453 = vpop.f32.mrb[0].mxu0
        %v454 = vadd.f32 0.0, %v453
        %v455 = vpop.f32.mrb[0].mxu0
        %v456 = vadd.f32 0.0, %v455
        %v457 = vpop.f32.mrb[0].mxu0
        %v458 = vadd.f32 0.0, %v457
        %v459 = vpop.f32.mrb[0].mxu0
        %v460 = vadd.f32 0.0, %v459
        %461 = vdwg.mxu0
        %462 = vmatprep.subr.bf16.mxu0 0
        %463 = vmatpush1.bf16.msra.mxu0 %v343
        %464 = vmatprep.subr.bf16.mxu0 0
        %465 = vmatpush1.bf16.msra.mxu0 %v346
        %466 = vmatprep.subr.bf16.mxu0 0
        %467 = vmatpush1.bf16.msra.mxu0 %v349
        %468 = vmatprep.subr.bf16.mxu0 0
        %469 = vmatpush1.bf16.msra.mxu0 %v352
        %470 = vmatprep.subr.bf16.mxu0 0
        %471 = vmatpush1.bf16.msra.mxu0 %v355
        %472 = vmatprep.subr.bf16.mxu0 0
        %473 = vmatpush1.bf16.msra.mxu0 %v358
        %474 = vmatprep.subr.bf16.mxu0 0
        %475 = vmatpush1.bf16.msra.mxu0 %v361
        %476 = vmatprep.subr.bf16.mxu0 0
        %477 = vmatpush1.bf16.msra.mxu0 %v364
        %478 = vmatprep.subr.bf16.mxu0 0
        %479 = vmatpush1.bf16.msra.mxu0 0
        %480 = vmatprep.subr.bf16.mxu0 0
        %481 = vmatpush1.bf16.msra.mxu0 0
        %482 = vmatprep.subr.bf16.mxu0 0
        %483 = vmatpush1.bf16.msra.mxu0 0
        %484 = vmatprep.subr.bf16.mxu0 0
        %485 = vmatpush1.bf16.msra.mxu0 0
        %486 = vmatprep.subr.bf16.mxu0 0
        %487 = vmatpush1.bf16.msra.mxu0 0
        %488 = vmatprep.subr.bf16.mxu0 0
        %489 = vmatpush1.bf16.msra.mxu0 0
        %490 = vmatprep.subr.bf16.mxu0 0
        %491 = vmatpush1.bf16.msra.mxu0 0
        %492 = vmatprep.subr.bf16.mxu0 0
        %493 = vmatpush1.bf16.msra.mxu0 0
        %494 = vmatprep.mubr.bf16.mxu0 0
        %495 = vmatmul.mubr.bf16.gmra.mrb[0].mxu0 %v253
        %v496 = vpop.f32.mrb[0].mxu0
        %v497 = vadd.f32 0.0, %v496
        %v498 = vpop.f32.mrb[0].mxu0
        %v499 = vpop.f32.mrb[0].mxu0
        %v500 = vadd.f32 0.0, %v499
        %v501 = vpop.f32.mrb[0].mxu0
        %502 = vmatprep.mubr.bf16.mxu0 0
        %503 = vmatmul.mubr.bf16.gmra.mrb[0].mxu0 %v254
        %v504 = vpop.f32.mrb[0].mxu0
        %v505 = vadd.f32 0.0, %v504
        %v506 = vpop.f32.mrb[0].mxu0
        %v507 = vpop.f32.mrb[0].mxu0
        %v508 = vadd.f32 0.0, %v507
        %v509 = vpop.f32.mrb[0].mxu0
        %510 = vmatprep.mubr.bf16.mxu0 0
        %511 = vmatmul.mubr.bf16.gmra.mrb[0].mxu0 %v255
        %v512 = vpop.f32.mrb[0].mxu0
        %v513 = vadd.f32 0.0, %v512
        %v514 = vpop.f32.mrb[0].mxu0
        %v515 = vpop.f32.mrb[0].mxu0
        %v516 = vadd.f32 0.0, %v515
        %v517 = vpop.f32.mrb[0].mxu0
        %518 = vmatprep.mubr.bf16.mxu0 0
        %519 = vmatmul.mubr.bf16.gmra.mrb[0].mxu0 %v256
        %v520 = vpop.f32.mrb[0].mxu0
        %v521 = vadd.f32 0.0, %v520
        %v522 = vpop.f32.mrb[0].mxu0
        %v523 = vpop.f32.mrb[0].mxu0
        %v524 = vadd.f32 0.0, %v523
        %v525 = vpop.f32.mrb[0].mxu0
        %526 = vdwg.mxu0
        %v527 = vmul.f32 %v424, 0.17677669
        %v528 = vmul.f32 %v428, 0.17677669
        %v529 = vmul.f32 %v434, 0.17677669
        %v530 = vmul.f32 %v438, 0.17677669
        %v531 = vmul.f32 %v444, 0.17677669
        %v532 = vmul.f32 %v448, 0.17677669
        %v533 = vmul.f32 %v454, 0.17677669
        %v534 = vmul.f32 %v458, 0.17677669
        %v535 = vpack.c.bf16 %v528, %v527
        %v536 = vpack.c.bf16 %v530, %v529
        %v537 = vpack.c.bf16 %v532, %v531
        %v538 = vpack.c.bf16 %v534, %v533
        %v539 = vpack.c.bf16 %v430, %v426
        %v540 = vpack.c.bf16 %v440, %v436
        %v541 = vpack.c.bf16 %v450, %v446
        %v542 = vpack.c.bf16 %v460, %v456
        %v543 = vpack.c.bf16 %v500, %v497
        %v544 = vpack.c.bf16 %v508, %v505
        %v545 = vpack.c.bf16 %v516, %v513
        %v546 = vpack.c.bf16 %v524, %v521
        %vm547 = vcmask 261120
        %v549 = vsel %vm547, %v535, 0
        %v552 = vsel %vm547, %v536, 0
        %v555 = vsel %vm547, %v537, 0
        %v558 = vsel %vm547, %v538, 0
        %v561 = vsel %vm547, %v539, 0
        %v564 = vsel %vm547, %v540, 0
        %v567 = vsel %vm547, %v541, 0
        %v570 = vsel %vm547, %v542, 0
        %572 = vmatprep.subr.bf16.mxu0 0
        %573 = vmatpush1.bf16.xpose.msra.mxu0 %v561
        %574 = vmatprep.subr.bf16.mxu0 0
        %575 = vmatpush1.bf16.xpose.msra.mxu0 %v564
        %576 = vmatprep.subr.bf16.mxu0 0
        %577 = vmatpush1.bf16.xpose.msra.mxu0 %v567
        %578 = vmatprep.subr.bf16.mxu0 0
        %579 = vmatpush1.bf16.xpose.msra.mxu0 %v570
        %580 = vmatprep.subr.bf16.mxu0 0
        %581 = vmatpush1.bf16.xpose.msra.mxu0 0
        %582 = vmatprep.subr.bf16.mxu0 0
        %583 = vmatpush1.bf16.xpose.msra.mxu0 0
        %584 = vmatprep.subr.bf16.mxu0 0
        %585 = vmatpush1.bf16.xpose.msra.mxu0 0
        %586 = vmatprep.subr.bf16.mxu0 0
        %587 = vmatpush1.bf16.xpose.msra.mxu0 0
        %588 = vmatprep.subr.bf16.mxu0 0
        %589 = vmatpush1.bf16.xpose.msra.mxu0 0
        %590 = vmatprep.subr.bf16.mxu0 0
        %591 = vmatpush1.bf16.xpose.msra.mxu0 0
        %592 = vmatprep.subr.bf16.mxu0 0
        %593 = vmatpush1.bf16.xpose.msra.mxu0 0
        %594 = vmatprep.subr.bf16.mxu0 0
        %595 = vmatpush1.bf16.xpose.msra.mxu0 0
        %596 = vmatprep.subr.bf16.mxu0 0
        %597 = vmatpush1.bf16.xpose.msra.mxu0 0
        %598 = vmatprep.subr.bf16.mxu0 0
        %599 = vmatpush1.bf16.xpose.msra.mxu0 0
        %600 = vmatprep.subr.bf16.mxu0 0
        %601 = vmatpush1.bf16.xpose.msra.mxu0 0
        %602 = vmatprep.subr.bf16.mxu0 0
        %603 = vmatpush1.bf16.xpose.msra.mxu0 0
        %604 = vmatprep.mubr.bf16.mxu0 0
        %605 = vmatmul.mubr.bf16.gmra.mrb[0].mxu0 %v549
        %v606 = vpop.f32.mrb[0].mxu0
        %v607 = vadd.f32 0.0, %v606
        %v608 = vpop.f32.mrb[0].mxu0
        %v609 = vpop.f32.mrb[0].mxu0
        %v610 = vadd.f32 0.0, %v609
        %v611 = vpop.f32.mrb[0].mxu0
        %612 = vmatprep.mubr.bf16.mxu0 0
        %613 = vmatmul.mubr.bf16.gmra.mrb[0].mxu0 %v552
        %v614 = vpop.f32.mrb[0].mxu0
        %v615 = vadd.f32 0.0, %v614
        %v616 = vpop.f32.mrb[0].mxu0
        %v617 = vpop.f32.mrb[0].mxu0
        %v618 = vadd.f32 0.0, %v617
        %v619 = vpop.f32.mrb[0].mxu0
        %620 = vmatprep.mubr.bf16.mxu0 0
        %621 = vmatmul.mubr.bf16.gmra.mrb[0].mxu0 %v555
        %v622 = vpop.f32.mrb[0].mxu0
        %v623 = vadd.f32 0.0, %v622
        %v624 = vpop.f32.mrb[0].mxu0
        %v625 = vpop.f32.mrb[0].mxu0
        %v626 = vadd.f32 0.0, %v625
        %v627 = vpop.f32.mrb[0].mxu0
        %628 = vmatprep.mubr.bf16.mxu0 0
        %629 = vmatmul.mubr.bf16.gmra.mrb[0].mxu0 %v558
        %v630 = vpop.f32.mrb[0].mxu0
        %v631 = vadd.f32 0.0, %v630
        %v632 = vpop.f32.mrb[0].mxu0
        %v633 = vpop.f32.mrb[0].mxu0
        %v634 = vadd.f32 0.0, %v633
        %v635 = vpop.f32.mrb[0].mxu0
        %636 = vdwg.mxu0
        %vm637 = vcmask 523264
        %v638 = vsel %vm637, %v607, -inf
        %639 = vmax.xlane.f32.xlu0 %v638
        %v640 = vpop.xlane.xlu0 %639
        %v641 = vsel %vm637, %v610, -inf
        %642 = vmax.xlane.f32.xlu0 %v641
        %v643 = vpop.xlane.xlu0 %642
        %v644 = vsel %vm637, %v615, -inf
        %645 = vmax.xlane.f32.xlu0 %v644
        %v646 = vpop.xlane.xlu0 %645
        %v647 = vsel %vm637, %v618, -inf
        %648 = vmax.xlane.f32.xlu0 %v647
        %v649 = vpop.xlane.xlu0 %648
        %v650 = vsel %vm637, %v623, -inf
        %651 = vmax.xlane.f32.xlu0 %v650
        %v652 = vpop.xlane.xlu0 %651
        %v653 = vsel %vm637, %v626, -inf
        %654 = vmax.xlane.f32.xlu0 %v653
        %v655 = vpop.xlane.xlu0 %654
        %v656 = vsel %vm637, %v631, -inf
        %657 = vmax.xlane.f32.xlu0 %v656
        %v658 = vpop.xlane.xlu0 %657
        %v659 = vsel %vm637, %v634, -inf
        %660 = vmax.xlane.f32.xlu0 %v659
        %v661 = vpop.xlane.xlu0 %660
        %v662 = vsub.f32 %v607, %v640
        %v663 = vsub.f32 %v610, %v643
        %v664 = vsub.f32 %v615, %v646
        %v665 = vsub.f32 %v618, %v649
        %v666 = vsub.f32 %v623, %v652
        %v667 = vsub.f32 %v626, %v655
        %v668 = vsub.f32 %v631, %v658
        %v669 = vsub.f32 %v634, %v661
        %v670 = vmul.f32 %v662, 1.442695
        %v671 = vpow.pop %v670
        %v672 = vmul.f32 %v663, 1.442695
        %v673 = vpow.pop %v672
        %v674 = vmul.f32 %v664, 1.442695
        %v675 = vpow.pop %v674
        %v676 = vmul.f32 %v665, 1.442695
        %v677 = vpow.pop %v676
        %v678 = vmul.f32 %v666, 1.442695
        %v679 = vpow.pop %v678
        %v680 = vmul.f32 %v667, 1.442695
        %v681 = vpow.pop %v680
        %v682 = vmul.f32 %v668, 1.442695
        %v683 = vpow.pop %v682
        %v684 = vmul.f32 %v669, 1.442695
        %v685 = vpow.pop %v684
        %v686 = vsel %vm637, %v671, 0.0
        %687 = vadd.xlane.f32.xlu0 %v686
        %v688 = vpop.xlane.xlu0 %687
        %v689 = vsel %vm637, %v673, 0.0
        %690 = vadd.xlane.f32.xlu0 %v689
        %v691 = vpop.xlane.xlu0 %690
        %v692 = vsel %vm637, %v675, 0.0
        %693 = vadd.xlane.f32.xlu0 %v692
        %v694 = vpop.xlane.xlu0 %693
        %v695 = vsel %vm637, %v677, 0.0
        %696 = vadd.xlane.f32.xlu0 %v695
        %v697 = vpop.xlane.xlu0 %696
        %v698 = vsel %vm637, %v679, 0.0
        %699 = vadd.xlane.f32.xlu0 %v698
        %v700 = vpop.xlane.xlu0 %699
        %v701 = vsel %vm637, %v681, 0.0
        %702 = vadd.xlane.f32.xlu0 %v701
        %v703 = vpop.xlane.xlu0 %702
        %v704 = vsel %vm637, %v683, 0.0
        %705 = vadd.xlane.f32.xlu0 %v704
        %v706 = vpop.xlane.xlu0 %705
        %v707 = vsel %vm637, %v685, 0.0
        %708 = vadd.xlane.f32.xlu0 %v707
        %v709 = vpop.xlane.xlu0 %708
        %v710 = vrcp.pop %v688
        %v711 = vrcp.pop %v691
        %v712 = vrcp.pop %v694
        %v713 = vrcp.pop %v697
        %v714 = vrcp.pop %v700
        %v715 = vrcp.pop %v703
        %v716 = vrcp.pop %v706
        %v717 = vrcp.pop %v709
        %v718 = vmul.f32 %v671, %v710
        %v719 = vmul.f32 %v673, %v711
        %v720 = vmul.f32 %v675, %v712
        %v721 = vmul.f32 %v677, %v713
        %v722 = vmul.f32 %v679, %v714
        %v723 = vmul.f32 %v681, %v715
        %v724 = vmul.f32 %v683, %v716
        %v725 = vmul.f32 %v685, %v717
        %v726 = vpack.c.bf16 %v719, %v718
        %v727 = vpack.c.bf16 %v721, %v720
        %v728 = vpack.c.bf16 %v723, %v722
        %v729 = vpack.c.bf16 %v725, %v724
        %v731 = vsel %vm637, %v726, 0
        %v734 = vsel %vm637, %v727, 0
        %v737 = vsel %vm637, %v728, 0
        %v740 = vsel %vm637, %v729, 0
        %742 = vmatprep.subr.bf16.mxu0 0
        %743 = vmatpush1.bf16.msra.mxu0 %v543
        %744 = vmatprep.subr.bf16.mxu0 0
        %745 = vmatpush1.bf16.msra.mxu0 %v544
        %746 = vmatprep.subr.bf16.mxu0 0
        %747 = vmatpush1.bf16.msra.mxu0 %v545
        %748 = vmatprep.subr.bf16.mxu0 0
        %749 = vmatpush1.bf16.msra.mxu0 %v546
        %750 = vmatprep.subr.bf16.mxu0 0
        %751 = vmatpush1.bf16.msra.mxu0 0
        %752 = vmatprep.subr.bf16.mxu0 0
        %753 = vmatpush1.bf16.msra.mxu0 0
        %754 = vmatprep.subr.bf16.mxu0 0
        %755 = vmatpush1.bf16.msra.mxu0 0
        %756 = vmatprep.subr.bf16.mxu0 0
        %757 = vmatpush1.bf16.msra.mxu0 0
        %758 = vmatprep.subr.bf16.mxu0 0
        %759 = vmatpush1.bf16.msra.mxu0 0
        %760 = vmatprep.subr.bf16.mxu0 0
        %761 = vmatpush1.bf16.msra.mxu0 0
        %762 = vmatprep.subr.bf16.mxu0 0
        %763 = vmatpush1.bf16.msra.mxu0 0
        %764 = vmatprep.subr.bf16.mxu0 0
        %765 = vmatpush1.bf16.msra.mxu0 0
        %766 = vmatprep.subr.bf16.mxu0 0
        %767 = vmatpush1.bf16.msra.mxu0 0
        %768 = vmatprep.subr.bf16.mxu0 0
        %769 = vmatpush1.bf16.msra.mxu0 0
        %770 = vmatprep.subr.bf16.mxu0 0
        %771 = vmatpush1.bf16.msra.mxu0 0
        %772 = vmatprep.subr.bf16.mxu0 0
        %773 = vmatpush1.bf16.msra.mxu0 0
        %774 = vmatprep.mubr.bf16.mxu0 0
        %775 = vmatmul.mubr.bf16.gmra.mrb[0].mxu0 %v731
        %v776 = vpop.f32.mrb[0].mxu0
        %v777 = vadd.f32 0.0, %v776
        %v778 = vpop.f32.mrb[0].mxu0
        %v779 = vpop.f32.mrb[0].mxu0
        %v780 = vadd.f32 0.0, %v779
        %v781 = vpop.f32.mrb[0].mxu0
        %782 = vmatprep.mubr.bf16.mxu0 0
        %783 = vmatmul.mubr.bf16.gmra.mrb[0].mxu0 %v734
        %v784 = vpop.f32.mrb[0].mxu0
        %v785 = vadd.f32 0.0, %v784
        %v786 = vpop.f32.mrb[0].mxu0
        %v787 = vpop.f32.mrb[0].mxu0
        %v788 = vadd.f32 0.0, %v787
        %v789 = vpop.f32.mrb[0].mxu0
        %790 = vmatprep.mubr.bf16.mxu0 0
        %791 = vmatmul.mubr.bf16.gmra.mrb[0].mxu0 %v737
        %v792 = vpop.f32.mrb[0].mxu0
        %v793 = vadd.f32 0.0, %v792
        %v794 = vpop.f32.mrb[0].mxu0
        %v795 = vpop.f32.mrb[0].mxu0
        %v796 = vadd.f32 0.0, %v795
        %v797 = vpop.f32.mrb[0].mxu0
        %798 = vmatprep.mubr.bf16.mxu0 0
        %799 = vmatmul.mubr.bf16.gmra.mrb[0].mxu0 %v740
        %v800 = vpop.f32.mrb[0].mxu0
        %v801 = vadd.f32 0.0, %v800
        %v802 = vpop.f32.mrb[0].mxu0
        %v803 = vpop.f32.mrb[0].mxu0
        %v804 = vadd.f32 0.0, %v803
        %v805 = vpop.f32.mrb[0].mxu0
        %806 = vdwg.mxu0
        %811 = vrot.lane.b32.xlu0 %v535, 96
        %v812 = vpop.permute.xlu0 %811
        %813 = vrot.lane.b32.xlu0 %v536, 96
        %v814 = vpop.permute.xlu0 %813
        %815 = vrot.lane.b32.xlu0 %v537, 96
        %v816 = vpop.permute.xlu0 %815
        %817 = vrot.lane.b32.xlu0 %v538, 96
        %v818 = vpop.permute.xlu0 %817
        %823 = vrot.lane.b32.xlu0 %v539, 96
        %v824 = vpop.permute.xlu0 %823
        %825 = vrot.lane.b32.xlu0 %v540, 96
        %v826 = vpop.permute.xlu0 %825
        %827 = vrot.lane.b32.xlu0 %v541, 96
        %v828 = vpop.permute.xlu0 %827
        %829 = vrot.lane.b32.xlu0 %v542, 96
        %v830 = vpop.permute.xlu0 %829
        %v832 = vsel %vm547, %v812, 0
        %v835 = vsel %vm547, %v814, 0
        %v838 = vsel %vm547, %v816, 0
        %v841 = vsel %vm547, %v818, 0
        %v844 = vsel %vm547, %v824, 0
        %v847 = vsel %vm547, %v826, 0
        %v850 = vsel %vm547, %v828, 0
        %v853 = vsel %vm547, %v830, 0
        %855 = vmatprep.subr.bf16.mxu0 0
        %856 = vmatpush1.bf16.xpose.msra.mxu0 %v844
        %857 = vmatprep.subr.bf16.mxu0 0
        %858 = vmatpush1.bf16.xpose.msra.mxu0 %v847
        %859 = vmatprep.subr.bf16.mxu0 0
        %860 = vmatpush1.bf16.xpose.msra.mxu0 %v850
        %861 = vmatprep.subr.bf16.mxu0 0
        %862 = vmatpush1.bf16.xpose.msra.mxu0 %v853
        %863 = vmatprep.subr.bf16.mxu0 0
        %864 = vmatpush1.bf16.xpose.msra.mxu0 0
        %865 = vmatprep.subr.bf16.mxu0 0
        %866 = vmatpush1.bf16.xpose.msra.mxu0 0
        %867 = vmatprep.subr.bf16.mxu0 0
        %868 = vmatpush1.bf16.xpose.msra.mxu0 0
        %869 = vmatprep.subr.bf16.mxu0 0
        %870 = vmatpush1.bf16.xpose.msra.mxu0 0
        %871 = vmatprep.subr.bf16.mxu0 0
        %872 = vmatpush1.bf16.xpose.msra.mxu0 0
        %873 = vmatprep.subr.bf16.mxu0 0
        %874 = vmatpush1.bf16.xpose.msra.mxu0 0
        %875 = vmatprep.subr.bf16.mxu0 0
        %876 = vmatpush1.bf16.xpose.msra.mxu0 0
        %877 = vmatprep.subr.bf16.mxu0 0
        %878 = vmatpush1.bf16.xpose.msra.mxu0 0
        %879 = vmatprep.subr.bf16.mxu0 0
        %880 = vmatpush1.bf16.xpose.msra.mxu0 0
        %881 = vmatprep.subr.bf16.mxu0 0
        %882 = vmatpush1.bf16.xpose.msra.mxu0 0
        %883 = vmatprep.subr.bf16.mxu0 0
        %884 = vmatpush1.bf16.xpose.msra.mxu0 0
        %885 = vmatprep.subr.bf16.mxu0 0
        %886 = vmatpush1.bf16.xpose.msra.mxu0 0
        %887 = vmatprep.mubr.bf16.mxu0 0
        %888 = vmatmul.mubr.bf16.gmra.mrb[0].mxu0 %v832
        %v889 = vpop.f32.mrb[0].mxu0
        %v890 = vadd.f32 0.0, %v889
        %v891 = vpop.f32.mrb[0].mxu0
        %v892 = vpop.f32.mrb[0].mxu0
        %v893 = vadd.f32 0.0, %v892
        %v894 = vpop.f32.mrb[0].mxu0
        %895 = vmatprep.mubr.bf16.mxu0 0
        %896 = vmatmul.mubr.bf16.gmra.mrb[0].mxu0 %v835
        %v897 = vpop.f32.mrb[0].mxu0
        %v898 = vadd.f32 0.0, %v897
        %v899 = vpop.f32.mrb[0].mxu0
        %v900 = vpop.f32.mrb[0].mxu0
        %v901 = vadd.f32 0.0, %v900
        %v902 = vpop.f32.mrb[0].mxu0
        %903 = vmatprep.mubr.bf16.mxu0 0
        %904 = vmatmul.mubr.bf16.gmra.mrb[0].mxu0 %v838
        %v905 = vpop.f32.mrb[0].mxu0
        %v906 = vadd.f32 0.0, %v905
        %v907 = vpop.f32.mrb[0].mxu0
        %v908 = vpop.f32.mrb[0].mxu0
        %v909 = vadd.f32 0.0, %v908
        %v910 = vpop.f32.mrb[0].mxu0
        %911 = vmatprep.mubr.bf16.mxu0 0
        %912 = vmatmul.mubr.bf16.gmra.mrb[0].mxu0 %v841
        %v913 = vpop.f32.mrb[0].mxu0
        %v914 = vadd.f32 0.0, %v913
        %v915 = vpop.f32.mrb[0].mxu0
        %v916 = vpop.f32.mrb[0].mxu0
        %v917 = vadd.f32 0.0, %v916
        %v918 = vpop.f32.mrb[0].mxu0
        %919 = vdwg.mxu0
        %v920 = vsel %vm637, %v890, -inf
        %921 = vmax.xlane.f32.xlu0 %v920
        %v922 = vpop.xlane.xlu0 %921
        %v923 = vsel %vm637, %v893, -inf
        %924 = vmax.xlane.f32.xlu0 %v923
        %v925 = vpop.xlane.xlu0 %924
        %v926 = vsel %vm637, %v898, -inf
        %927 = vmax.xlane.f32.xlu0 %v926
        %v928 = vpop.xlane.xlu0 %927
        %v929 = vsel %vm637, %v901, -inf
        %930 = vmax.xlane.f32.xlu0 %v929
        %v931 = vpop.xlane.xlu0 %930
        %v932 = vsel %vm637, %v906, -inf
        %933 = vmax.xlane.f32.xlu0 %v932
        %v934 = vpop.xlane.xlu0 %933
        %v935 = vsel %vm637, %v909, -inf
        %936 = vmax.xlane.f32.xlu0 %v935
        %v937 = vpop.xlane.xlu0 %936
        %v938 = vsel %vm637, %v914, -inf
        %939 = vmax.xlane.f32.xlu0 %v938
        %v940 = vpop.xlane.xlu0 %939
        %v941 = vsel %vm637, %v917, -inf
        %942 = vmax.xlane.f32.xlu0 %v941
        %v943 = vpop.xlane.xlu0 %942
        %v944 = vsub.f32 %v890, %v922
        %v945 = vsub.f32 %v893, %v925
        %v946 = vsub.f32 %v898, %v928
        %v947 = vsub.f32 %v901, %v931
        %v948 = vsub.f32 %v906, %v934
        %v949 = vsub.f32 %v909, %v937
        %v950 = vsub.f32 %v914, %v940
        %v951 = vsub.f32 %v917, %v943
        %v952 = vmul.f32 %v944, 1.442695
        %v953 = vpow.pop %v952
        %v954 = vmul.f32 %v945, 1.442695
        %v955 = vpow.pop %v954
        %v956 = vmul.f32 %v946, 1.442695
        %v957 = vpow.pop %v956
        %v958 = vmul.f32 %v947, 1.442695
        %v959 = vpow.pop %v958
        %v960 = vmul.f32 %v948, 1.442695
        %v961 = vpow.pop %v960
        %v962 = vmul.f32 %v949, 1.442695
        %v963 = vpow.pop %v962
        %v964 = vmul.f32 %v950, 1.442695
        %v965 = vpow.pop %v964
        %v966 = vmul.f32 %v951, 1.442695
        %v967 = vpow.pop %v966
        %v968 = vsel %vm637, %v953, 0.0
        %969 = vadd.xlane.f32.xlu0 %v968
        %v970 = vpop.xlane.xlu0 %969
        %v971 = vsel %vm637, %v955, 0.0
        %972 = vadd.xlane.f32.xlu0 %v971
        %v973 = vpop.xlane.xlu0 %972
        %v974 = vsel %vm637, %v957, 0.0
        %975 = vadd.xlane.f32.xlu0 %v974
        %v976 = vpop.xlane.xlu0 %975
        %v977 = vsel %vm637, %v959, 0.0
        %978 = vadd.xlane.f32.xlu0 %v977
        %v979 = vpop.xlane.xlu0 %978
        %v980 = vsel %vm637, %v961, 0.0
        %981 = vadd.xlane.f32.xlu0 %v980
        %v982 = vpop.xlane.xlu0 %981
        %v983 = vsel %vm637, %v963, 0.0
        %984 = vadd.xlane.f32.xlu0 %v983
        %v985 = vpop.xlane.xlu0 %984
        %v986 = vsel %vm637, %v965, 0.0
        %987 = vadd.xlane.f32.xlu0 %v986
        %v988 = vpop.xlane.xlu0 %987
        %v989 = vsel %vm637, %v967, 0.0
        %990 = vadd.xlane.f32.xlu0 %v989
        %v991 = vpop.xlane.xlu0 %990
        %v992 = vrcp.pop %v970
        %v993 = vrcp.pop %v973
        %v994 = vrcp.pop %v976
        %v995 = vrcp.pop %v979
        %v996 = vrcp.pop %v982
        %v997 = vrcp.pop %v985
        %v998 = vrcp.pop %v988
        %v999 = vrcp.pop %v991
        %v1000 = vmul.f32 %v953, %v992
        %v1001 = vmul.f32 %v955, %v993
        %v1002 = vmul.f32 %v957, %v994
        %v1003 = vmul.f32 %v959, %v995
        %v1004 = vmul.f32 %v961, %v996
        %v1005 = vmul.f32 %v963, %v997
        %v1006 = vmul.f32 %v965, %v998
        %v1007 = vmul.f32 %v967, %v999
        %v1008 = vpack.c.bf16 %v1001, %v1000
        %v1009 = vpack.c.bf16 %v1003, %v1002
        %v1010 = vpack.c.bf16 %v1005, %v1004
        %v1011 = vpack.c.bf16 %v1007, %v1006
        %1016 = vrot.lane.b32.xlu0 %v543, 96
        %v1017 = vpop.permute.xlu0 %1016
        %1018 = vrot.lane.b32.xlu0 %v544, 96
        %v1019 = vpop.permute.xlu0 %1018
        %1020 = vrot.lane.b32.xlu0 %v545, 96
        %v1021 = vpop.permute.xlu0 %1020
        %1022 = vrot.lane.b32.xlu0 %v546, 96
        %v1023 = vpop.permute.xlu0 %1022
        %v1029 = vsel %vm637, %v1008, 0
        %v1032 = vsel %vm637, %v1009, 0
        %v1035 = vsel %vm637, %v1010, 0
        %v1038 = vsel %vm637, %v1011, 0
        %1040 = vmatprep.subr.bf16.mxu0 0
        %1041 = vmatpush1.bf16.msra.mxu0 %v1017
        %1042 = vmatprep.subr.bf16.mxu0 0
        %1043 = vmatpush1.bf16.msra.mxu0 %v1019
        %1044 = vmatprep.subr.bf16.mxu0 0
        %1045 = vmatpush1.bf16.msra.mxu0 %v1021
        %1046 = vmatprep.subr.bf16.mxu0 0
        %1047 = vmatpush1.bf16.msra.mxu0 %v1023
        %1048 = vmatprep.subr.bf16.mxu0 0
        %1049 = vmatpush1.bf16.msra.mxu0 0
        %1050 = vmatprep.subr.bf16.mxu0 0
        %1051 = vmatpush1.bf16.msra.mxu0 0
        %1052 = vmatprep.subr.bf16.mxu0 0
        %1053 = vmatpush1.bf16.msra.mxu0 0
        %1054 = vmatprep.subr.bf16.mxu0 0
        %1055 = vmatpush1.bf16.msra.mxu0 0
        %1056 = vmatprep.subr.bf16.mxu0 0
        %1057 = vmatpush1.bf16.msra.mxu0 0
        %1058 = vmatprep.subr.bf16.mxu0 0
        %1059 = vmatpush1.bf16.msra.mxu0 0
        %1060 = vmatprep.subr.bf16.mxu0 0
        %1061 = vmatpush1.bf16.msra.mxu0 0
        %1062 = vmatprep.subr.bf16.mxu0 0
        %1063 = vmatpush1.bf16.msra.mxu0 0
        %1064 = vmatprep.subr.bf16.mxu0 0
        %1065 = vmatpush1.bf16.msra.mxu0 0
        %1066 = vmatprep.subr.bf16.mxu0 0
        %1067 = vmatpush1.bf16.msra.mxu0 0
        %1068 = vmatprep.subr.bf16.mxu0 0
        %1069 = vmatpush1.bf16.msra.mxu0 0
        %1070 = vmatprep.subr.bf16.mxu0 0
        %1071 = vmatpush1.bf16.msra.mxu0 0
        %1072 = vmatprep.mubr.bf16.mxu0 0
        %1073 = vmatmul.mubr.bf16.gmra.mrb[0].mxu0 %v1029
        %v1074 = vpop.f32.mrb[0].mxu0
        %v1075 = vadd.f32 0.0, %v1074
        %v1076 = vpop.f32.mrb[0].mxu0
        %v1077 = vpop.f32.mrb[0].mxu0
        %v1078 = vadd.f32 0.0, %v1077
        %v1079 = vpop.f32.mrb[0].mxu0
        %1080 = vmatprep.mubr.bf16.mxu0 0
        %1081 = vmatmul.mubr.bf16.gmra.mrb[0].mxu0 %v1032
        %v1082 = vpop.f32.mrb[0].mxu0
        %v1083 = vadd.f32 0.0, %v1082
        %v1084 = vpop.f32.mrb[0].mxu0
        %v1085 = vpop.f32.mrb[0].mxu0
        %v1086 = vadd.f32 0.0, %v1085
        %v1087 = vpop.f32.mrb[0].mxu0
        %1088 = vmatprep.mubr.bf16.mxu0 0
        %1089 = vmatmul.mubr.bf16.gmra.mrb[0].mxu0 %v1035
        %v1090 = vpop.f32.mrb[0].mxu0
        %v1091 = vadd.f32 0.0, %v1090
        %v1092 = vpop.f32.mrb[0].mxu0
        %v1093 = vpop.f32.mrb[0].mxu0
        %v1094 = vadd.f32 0.0, %v1093
        %v1095 = vpop.f32.mrb[0].mxu0
        %1096 = vmatprep.mubr.bf16.mxu0 0
        %1097 = vmatmul.mubr.bf16.gmra.mrb[0].mxu0 %v1038
        %v1098 = vpop.f32.mrb[0].mxu0
        %v1099 = vadd.f32 0.0, %v1098
        %v1100 = vpop.f32.mrb[0].mxu0
        %v1101 = vpop.f32.mrb[0].mxu0
        %v1102 = vadd.f32 0.0, %v1101
        %v1103 = vpop.f32.mrb[0].mxu0
        %1104 = vdwg.mxu0
        %1105 = vrot.lane.b32.xlu0 %v535, 64
        %v1106 = vpop.permute.xlu0 %1105
        %1107 = vrot.lane.b32.xlu0 %v536, 64
        %v1108 = vpop.permute.xlu0 %1107
        %1109 = vrot.lane.b32.xlu0 %v537, 64
        %v1110 = vpop.permute.xlu0 %1109
        %1111 = vrot.lane.b32.xlu0 %v538, 64
        %v1112 = vpop.permute.xlu0 %1111
        %1113 = vrot.lane.b32.xlu0 %v539, 64
        %v1114 = vpop.permute.xlu0 %1113
        %1115 = vrot.lane.b32.xlu0 %v540, 64
        %v1116 = vpop.permute.xlu0 %1115
        %1117 = vrot.lane.b32.xlu0 %v541, 64
        %v1118 = vpop.permute.xlu0 %1117
        %1119 = vrot.lane.b32.xlu0 %v542, 64
        %v1120 = vpop.permute.xlu0 %1119
        %v1122 = vsel %vm547, %v1106, 0
        %v1125 = vsel %vm547, %v1108, 0
        %v1128 = vsel %vm547, %v1110, 0
        %v1131 = vsel %vm547, %v1112, 0
        %v1134 = vsel %vm547, %v1114, 0
        %v1137 = vsel %vm547, %v1116, 0
        %v1140 = vsel %vm547, %v1118, 0
        %v1143 = vsel %vm547, %v1120, 0
        %1145 = vmatprep.subr.bf16.mxu0 0
        %1146 = vmatpush1.bf16.xpose.msra.mxu0 %v1134
        %1147 = vmatprep.subr.bf16.mxu0 0
        %1148 = vmatpush1.bf16.xpose.msra.mxu0 %v1137
        %1149 = vmatprep.subr.bf16.mxu0 0
        %1150 = vmatpush1.bf16.xpose.msra.mxu0 %v1140
        %1151 = vmatprep.subr.bf16.mxu0 0
        %1152 = vmatpush1.bf16.xpose.msra.mxu0 %v1143
        %1153 = vmatprep.subr.bf16.mxu0 0
        %1154 = vmatpush1.bf16.xpose.msra.mxu0 0
        %1155 = vmatprep.subr.bf16.mxu0 0
        %1156 = vmatpush1.bf16.xpose.msra.mxu0 0
        %1157 = vmatprep.subr.bf16.mxu0 0
        %1158 = vmatpush1.bf16.xpose.msra.mxu0 0
        %1159 = vmatprep.subr.bf16.mxu0 0
        %1160 = vmatpush1.bf16.xpose.msra.mxu0 0
        %1161 = vmatprep.subr.bf16.mxu0 0
        %1162 = vmatpush1.bf16.xpose.msra.mxu0 0
        %1163 = vmatprep.subr.bf16.mxu0 0
        %1164 = vmatpush1.bf16.xpose.msra.mxu0 0
        %1165 = vmatprep.subr.bf16.mxu0 0
        %1166 = vmatpush1.bf16.xpose.msra.mxu0 0
        %1167 = vmatprep.subr.bf16.mxu0 0
        %1168 = vmatpush1.bf16.xpose.msra.mxu0 0
        %1169 = vmatprep.subr.bf16.mxu0 0
        %1170 = vmatpush1.bf16.xpose.msra.mxu0 0
        %1171 = vmatprep.subr.bf16.mxu0 0
        %1172 = vmatpush1.bf16.xpose.msra.mxu0 0
        %1173 = vmatprep.subr.bf16.mxu0 0
        %1174 = vmatpush1.bf16.xpose.msra.mxu0 0
        %1175 = vmatprep.subr.bf16.mxu0 0
        %1176 = vmatpush1.bf16.xpose.msra.mxu0 0
        %1177 = vmatprep.mubr.bf16.mxu0 0
        %1178 = vmatmul.mubr.bf16.gmra.mrb[0].mxu0 %v1122
        %v1179 = vpop.f32.mrb[0].mxu0
        %v1180 = vadd.f32 0.0, %v1179
        %v1181 = vpop.f32.mrb[0].mxu0
        %v1182 = vpop.f32.mrb[0].mxu0
        %v1183 = vadd.f32 0.0, %v1182
        %v1184 = vpop.f32.mrb[0].mxu0
        %1185 = vmatprep.mubr.bf16.mxu0 0
        %1186 = vmatmul.mubr.bf16.gmra.mrb[0].mxu0 %v1125
        %v1187 = vpop.f32.mrb[0].mxu0
        %v1188 = vadd.f32 0.0, %v1187
        %v1189 = vpop.f32.mrb[0].mxu0
        %v1190 = vpop.f32.mrb[0].mxu0
        %v1191 = vadd.f32 0.0, %v1190
        %v1192 = vpop.f32.mrb[0].mxu0
        %1193 = vmatprep.mubr.bf16.mxu0 0
        %1194 = vmatmul.mubr.bf16.gmra.mrb[0].mxu0 %v1128
        %v1195 = vpop.f32.mrb[0].mxu0
        %v1196 = vadd.f32 0.0, %v1195
        %v1197 = vpop.f32.mrb[0].mxu0
        %v1198 = vpop.f32.mrb[0].mxu0
        %v1199 = vadd.f32 0.0, %v1198
        %v1200 = vpop.f32.mrb[0].mxu0
        %1201 = vmatprep.mubr.bf16.mxu0 0
        %1202 = vmatmul.mubr.bf16.gmra.mrb[0].mxu0 %v1131
        %v1203 = vpop.f32.mrb[0].mxu0
        %v1204 = vadd.f32 0.0, %v1203
        %v1205 = vpop.f32.mrb[0].mxu0
        %v1206 = vpop.f32.mrb[0].mxu0
        %v1207 = vadd.f32 0.0, %v1206
        %v1208 = vpop.f32.mrb[0].mxu0
        %1209 = vdwg.mxu0
        %v1210 = vsel %vm637, %v1180, -inf
        %1211 = vmax.xlane.f32.xlu0 %v1210
        %v1212 = vpop.xlane.xlu0 %1211
        %v1213 = vsel %vm637, %v1183, -inf
        %1214 = vmax.xlane.f32.xlu0 %v1213
        %v1215 = vpop.xlane.xlu0 %1214
        %v1216 = vsel %vm637, %v1188, -inf
        %1217 = vmax.xlane.f32.xlu0 %v1216
        %v1218 = vpop.xlane.xlu0 %1217
        %v1219 = vsel %vm637, %v1191, -inf
        %1220 = vmax.xlane.f32.xlu0 %v1219
        %v1221 = vpop.xlane.xlu0 %1220
        %v1222 = vsel %vm637, %v1196, -inf
        %1223 = vmax.xlane.f32.xlu0 %v1222
        %v1224 = vpop.xlane.xlu0 %1223
        %v1225 = vsel %vm637, %v1199, -inf
        %1226 = vmax.xlane.f32.xlu0 %v1225
        %v1227 = vpop.xlane.xlu0 %1226
        %v1228 = vsel %vm637, %v1204, -inf
        %1229 = vmax.xlane.f32.xlu0 %v1228
        %v1230 = vpop.xlane.xlu0 %1229
        %v1231 = vsel %vm637, %v1207, -inf
        %1232 = vmax.xlane.f32.xlu0 %v1231
        %v1233 = vpop.xlane.xlu0 %1232
        %v1234 = vsub.f32 %v1180, %v1212
        %v1235 = vsub.f32 %v1183, %v1215
        %v1236 = vsub.f32 %v1188, %v1218
        %v1237 = vsub.f32 %v1191, %v1221
        %v1238 = vsub.f32 %v1196, %v1224
        %v1239 = vsub.f32 %v1199, %v1227
        %v1240 = vsub.f32 %v1204, %v1230
        %v1241 = vsub.f32 %v1207, %v1233
        %v1242 = vmul.f32 %v1234, 1.442695
        %v1243 = vpow.pop %v1242
        %v1244 = vmul.f32 %v1235, 1.442695
        %v1245 = vpow.pop %v1244
        %v1246 = vmul.f32 %v1236, 1.442695
        %v1247 = vpow.pop %v1246
        %v1248 = vmul.f32 %v1237, 1.442695
        %v1249 = vpow.pop %v1248
        %v1250 = vmul.f32 %v1238, 1.442695
        %v1251 = vpow.pop %v1250
        %v1252 = vmul.f32 %v1239, 1.442695
        %v1253 = vpow.pop %v1252
        %v1254 = vmul.f32 %v1240, 1.442695
        %v1255 = vpow.pop %v1254
        %v1256 = vmul.f32 %v1241, 1.442695
        %v1257 = vpow.pop %v1256
        %v1258 = vsel %vm637, %v1243, 0.0
        %1259 = vadd.xlane.f32.xlu0 %v1258
        %v1260 = vpop.xlane.xlu0 %1259
        %v1261 = vsel %vm637, %v1245, 0.0
        %1262 = vadd.xlane.f32.xlu0 %v1261
        %v1263 = vpop.xlane.xlu0 %1262
        %v1264 = vsel %vm637, %v1247, 0.0
        %1265 = vadd.xlane.f32.xlu0 %v1264
        %v1266 = vpop.xlane.xlu0 %1265
        %v1267 = vsel %vm637, %v1249, 0.0
        %1268 = vadd.xlane.f32.xlu0 %v1267
        %v1269 = vpop.xlane.xlu0 %1268
        %v1270 = vsel %vm637, %v1251, 0.0
        %1271 = vadd.xlane.f32.xlu0 %v1270
        %v1272 = vpop.xlane.xlu0 %1271
        %v1273 = vsel %vm637, %v1253, 0.0
        %1274 = vadd.xlane.f32.xlu0 %v1273
        %v1275 = vpop.xlane.xlu0 %1274
        %v1276 = vsel %vm637, %v1255, 0.0
        %1277 = vadd.xlane.f32.xlu0 %v1276
        %v1278 = vpop.xlane.xlu0 %1277
        %v1279 = vsel %vm637, %v1257, 0.0
        %1280 = vadd.xlane.f32.xlu0 %v1279
        %v1281 = vpop.xlane.xlu0 %1280
        %v1282 = vrcp.pop %v1260
        %v1283 = vrcp.pop %v1263
        %v1284 = vrcp.pop %v1266
        %v1285 = vrcp.pop %v1269
        %v1286 = vrcp.pop %v1272
        %v1287 = vrcp.pop %v1275
        %v1288 = vrcp.pop %v1278
        %v1289 = vrcp.pop %v1281
        %v1290 = vmul.f32 %v1243, %v1282
        %v1291 = vmul.f32 %v1245, %v1283
        %v1292 = vmul.f32 %v1247, %v1284
        %v1293 = vmul.f32 %v1249, %v1285
        %v1294 = vmul.f32 %v1251, %v1286
        %v1295 = vmul.f32 %v1253, %v1287
        %v1296 = vmul.f32 %v1255, %v1288
        %v1297 = vmul.f32 %v1257, %v1289
        %v1298 = vpack.c.bf16 %v1291, %v1290
        %v1299 = vpack.c.bf16 %v1293, %v1292
        %v1300 = vpack.c.bf16 %v1295, %v1294
        %v1301 = vpack.c.bf16 %v1297, %v1296
        %1302 = vrot.lane.b32.xlu0 %v543, 64
        %v1303 = vpop.permute.xlu0 %1302
        %1304 = vrot.lane.b32.xlu0 %v544, 64
        %v1305 = vpop.permute.xlu0 %1304
        %1306 = vrot.lane.b32.xlu0 %v545, 64
        %v1307 = vpop.permute.xlu0 %1306
        %1308 = vrot.lane.b32.xlu0 %v546, 64
        %v1309 = vpop.permute.xlu0 %1308
        %v1315 = vsel %vm637, %v1298, 0
        %v1318 = vsel %vm637, %v1299, 0
        %v1321 = vsel %vm637, %v1300, 0
        %v1324 = vsel %vm637, %v1301, 0
        %1326 = vmatprep.subr.bf16.mxu0 0
        %1327 = vmatpush1.bf16.msra.mxu0 %v1303
        %1328 = vmatprep.subr.bf16.mxu0 0
        %1329 = vmatpush1.bf16.msra.mxu0 %v1305
        %1330 = vmatprep.subr.bf16.mxu0 0
        %1331 = vmatpush1.bf16.msra.mxu0 %v1307
        %1332 = vmatprep.subr.bf16.mxu0 0
        %1333 = vmatpush1.bf16.msra.mxu0 %v1309
        %1334 = vmatprep.subr.bf16.mxu0 0
        %1335 = vmatpush1.bf16.msra.mxu0 0
        %1336 = vmatprep.subr.bf16.mxu0 0
        %1337 = vmatpush1.bf16.msra.mxu0 0
        %1338 = vmatprep.subr.bf16.mxu0 0
        %1339 = vmatpush1.bf16.msra.mxu0 0
        %1340 = vmatprep.subr.bf16.mxu0 0
        %1341 = vmatpush1.bf16.msra.mxu0 0
        %1342 = vmatprep.subr.bf16.mxu0 0
        %1343 = vmatpush1.bf16.msra.mxu0 0
        %1344 = vmatprep.subr.bf16.mxu0 0
        %1345 = vmatpush1.bf16.msra.mxu0 0
        %1346 = vmatprep.subr.bf16.mxu0 0
        %1347 = vmatpush1.bf16.msra.mxu0 0
        %1348 = vmatprep.subr.bf16.mxu0 0
        %1349 = vmatpush1.bf16.msra.mxu0 0
        %1350 = vmatprep.subr.bf16.mxu0 0
        %1351 = vmatpush1.bf16.msra.mxu0 0
        %1352 = vmatprep.subr.bf16.mxu0 0
        %1353 = vmatpush1.bf16.msra.mxu0 0
        %1354 = vmatprep.subr.bf16.mxu0 0
        %1355 = vmatpush1.bf16.msra.mxu0 0
        %1356 = vmatprep.subr.bf16.mxu0 0
        %1357 = vmatpush1.bf16.msra.mxu0 0
        %1358 = vmatprep.mubr.bf16.mxu0 0
        %1359 = vmatmul.mubr.bf16.gmra.mrb[0].mxu0 %v1315
        %v1360 = vpop.f32.mrb[0].mxu0
        %v1361 = vadd.f32 0.0, %v1360
        %v1362 = vpop.f32.mrb[0].mxu0
        %v1363 = vpop.f32.mrb[0].mxu0
        %v1364 = vadd.f32 0.0, %v1363
        %v1365 = vpop.f32.mrb[0].mxu0
        %1366 = vmatprep.mubr.bf16.mxu0 0
        %1367 = vmatmul.mubr.bf16.gmra.mrb[0].mxu0 %v1318
        %v1368 = vpop.f32.mrb[0].mxu0
        %v1369 = vadd.f32 0.0, %v1368
        %v1370 = vpop.f32.mrb[0].mxu0
        %v1371 = vpop.f32.mrb[0].mxu0
        %v1372 = vadd.f32 0.0, %v1371
        %v1373 = vpop.f32.mrb[0].mxu0
        %1374 = vmatprep.mubr.bf16.mxu0 0
        %1375 = vmatmul.mubr.bf16.gmra.mrb[0].mxu0 %v1321
        %v1376 = vpop.f32.mrb[0].mxu0
        %v1377 = vadd.f32 0.0, %v1376
        %v1378 = vpop.f32.mrb[0].mxu0
        %v1379 = vpop.f32.mrb[0].mxu0
        %v1380 = vadd.f32 0.0, %v1379
        %v1381 = vpop.f32.mrb[0].mxu0
        %1382 = vmatprep.mubr.bf16.mxu0 0
        %1383 = vmatmul.mubr.bf16.gmra.mrb[0].mxu0 %v1324
        %v1384 = vpop.f32.mrb[0].mxu0
        %v1385 = vadd.f32 0.0, %v1384
        %v1386 = vpop.f32.mrb[0].mxu0
        %v1387 = vpop.f32.mrb[0].mxu0
        %v1388 = vadd.f32 0.0, %v1387
        %v1389 = vpop.f32.mrb[0].mxu0
        %1390 = vdwg.mxu0
        %1391 = vrot.lane.b32.xlu0 %v535, 32
        %v1392 = vpop.permute.xlu0 %1391
        %1393 = vrot.lane.b32.xlu0 %v536, 32
        %v1394 = vpop.permute.xlu0 %1393
        %1395 = vrot.lane.b32.xlu0 %v537, 32
        %v1396 = vpop.permute.xlu0 %1395
        %1397 = vrot.lane.b32.xlu0 %v538, 32
        %v1398 = vpop.permute.xlu0 %1397
        %1399 = vrot.lane.b32.xlu0 %v539, 32
        %v1400 = vpop.permute.xlu0 %1399
        %1401 = vrot.lane.b32.xlu0 %v540, 32
        %v1402 = vpop.permute.xlu0 %1401
        %1403 = vrot.lane.b32.xlu0 %v541, 32
        %v1404 = vpop.permute.xlu0 %1403
        %1405 = vrot.lane.b32.xlu0 %v542, 32
        %v1406 = vpop.permute.xlu0 %1405
        %v1408 = vsel %vm547, %v1392, 0
        %v1411 = vsel %vm547, %v1394, 0
        %v1414 = vsel %vm547, %v1396, 0
        %v1417 = vsel %vm547, %v1398, 0
        %v1420 = vsel %vm547, %v1400, 0
        %v1423 = vsel %vm547, %v1402, 0
        %v1426 = vsel %vm547, %v1404, 0
        %v1429 = vsel %vm547, %v1406, 0
        %1431 = vmatprep.subr.bf16.mxu0 0
        %1432 = vmatpush1.bf16.xpose.msra.mxu0 %v1420
        %1433 = vmatprep.subr.bf16.mxu0 0
        %1434 = vmatpush1.bf16.xpose.msra.mxu0 %v1423
        %1435 = vmatprep.subr.bf16.mxu0 0
        %1436 = vmatpush1.bf16.xpose.msra.mxu0 %v1426
        %1437 = vmatprep.subr.bf16.mxu0 0
        %1438 = vmatpush1.bf16.xpose.msra.mxu0 %v1429
        %1439 = vmatprep.subr.bf16.mxu0 0
        %1440 = vmatpush1.bf16.xpose.msra.mxu0 0
        %1441 = vmatprep.subr.bf16.mxu0 0
        %1442 = vmatpush1.bf16.xpose.msra.mxu0 0
        %1443 = vmatprep.subr.bf16.mxu0 0
        %1444 = vmatpush1.bf16.xpose.msra.mxu0 0
        %1445 = vmatprep.subr.bf16.mxu0 0
        %1446 = vmatpush1.bf16.xpose.msra.mxu0 0
        %1447 = vmatprep.subr.bf16.mxu0 0
        %1448 = vmatpush1.bf16.xpose.msra.mxu0 0
        %1449 = vmatprep.subr.bf16.mxu0 0
        %1450 = vmatpush1.bf16.xpose.msra.mxu0 0
        %1451 = vmatprep.subr.bf16.mxu0 0
        %1452 = vmatpush1.bf16.xpose.msra.mxu0 0
        %1453 = vmatprep.subr.bf16.mxu0 0
        %1454 = vmatpush1.bf16.xpose.msra.mxu0 0
        %1455 = vmatprep.subr.bf16.mxu0 0
        %1456 = vmatpush1.bf16.xpose.msra.mxu0 0
        %1457 = vmatprep.subr.bf16.mxu0 0
        %1458 = vmatpush1.bf16.xpose.msra.mxu0 0
        %1459 = vmatprep.subr.bf16.mxu0 0
        %1460 = vmatpush1.bf16.xpose.msra.mxu0 0
        %1461 = vmatprep.subr.bf16.mxu0 0
        %1462 = vmatpush1.bf16.xpose.msra.mxu0 0
        %1463 = vmatprep.mubr.bf16.mxu0 0
        %1464 = vmatmul.mubr.bf16.gmra.mrb[0].mxu0 %v1408
        %v1465 = vpop.f32.mrb[0].mxu0
        %v1466 = vadd.f32 0.0, %v1465
        %v1467 = vpop.f32.mrb[0].mxu0
        %v1468 = vpop.f32.mrb[0].mxu0
        %v1469 = vadd.f32 0.0, %v1468
        %v1470 = vpop.f32.mrb[0].mxu0
        %1471 = vmatprep.mubr.bf16.mxu0 0
        %1472 = vmatmul.mubr.bf16.gmra.mrb[0].mxu0 %v1411
        %v1473 = vpop.f32.mrb[0].mxu0
        %v1474 = vadd.f32 0.0, %v1473
        %v1475 = vpop.f32.mrb[0].mxu0
        %v1476 = vpop.f32.mrb[0].mxu0
        %v1477 = vadd.f32 0.0, %v1476
        %v1478 = vpop.f32.mrb[0].mxu0
        %1479 = vmatprep.mubr.bf16.mxu0 0
        %1480 = vmatmul.mubr.bf16.gmra.mrb[0].mxu0 %v1414
        %v1481 = vpop.f32.mrb[0].mxu0
        %v1482 = vadd.f32 0.0, %v1481
        %v1483 = vpop.f32.mrb[0].mxu0
        %v1484 = vpop.f32.mrb[0].mxu0
        %v1485 = vadd.f32 0.0, %v1484
        %v1486 = vpop.f32.mrb[0].mxu0
        %1487 = vmatprep.mubr.bf16.mxu0 0
        %1488 = vmatmul.mubr.bf16.gmra.mrb[0].mxu0 %v1417
        %v1489 = vpop.f32.mrb[0].mxu0
        %v1490 = vadd.f32 0.0, %v1489
        %v1491 = vpop.f32.mrb[0].mxu0
        %v1492 = vpop.f32.mrb[0].mxu0
        %v1493 = vadd.f32 0.0, %v1492
        %v1494 = vpop.f32.mrb[0].mxu0
        %1495 = vdwg.mxu0
        %v1496 = vsel %vm637, %v1466, -inf
        %1497 = vmax.xlane.f32.xlu0 %v1496
        %v1498 = vpop.xlane.xlu0 %1497
        %v1499 = vsel %vm637, %v1469, -inf
        %1500 = vmax.xlane.f32.xlu0 %v1499
        %v1501 = vpop.xlane.xlu0 %1500
        %v1502 = vsel %vm637, %v1474, -inf
        %1503 = vmax.xlane.f32.xlu0 %v1502
        %v1504 = vpop.xlane.xlu0 %1503
        %v1505 = vsel %vm637, %v1477, -inf
        %1506 = vmax.xlane.f32.xlu0 %v1505
        %v1507 = vpop.xlane.xlu0 %1506
        %v1508 = vsel %vm637, %v1482, -inf
        %1509 = vmax.xlane.f32.xlu0 %v1508
        %v1510 = vpop.xlane.xlu0 %1509
        %v1511 = vsel %vm637, %v1485, -inf
        %1512 = vmax.xlane.f32.xlu0 %v1511
        %v1513 = vpop.xlane.xlu0 %1512
        %v1514 = vsel %vm637, %v1490, -inf
        %1515 = vmax.xlane.f32.xlu0 %v1514
        %v1516 = vpop.xlane.xlu0 %1515
        %v1517 = vsel %vm637, %v1493, -inf
        %1518 = vmax.xlane.f32.xlu0 %v1517
        %v1519 = vpop.xlane.xlu0 %1518
        %v1520 = vsub.f32 %v1466, %v1498
        %v1521 = vsub.f32 %v1469, %v1501
        %v1522 = vsub.f32 %v1474, %v1504
        %v1523 = vsub.f32 %v1477, %v1507
        %v1524 = vsub.f32 %v1482, %v1510
        %v1525 = vsub.f32 %v1485, %v1513
        %v1526 = vsub.f32 %v1490, %v1516
        %v1527 = vsub.f32 %v1493, %v1519
        %v1528 = vmul.f32 %v1520, 1.442695
        %v1529 = vpow.pop %v1528
        %v1530 = vmul.f32 %v1521, 1.442695
        %v1531 = vpow.pop %v1530
        %v1532 = vmul.f32 %v1522, 1.442695
        %v1533 = vpow.pop %v1532
        %v1534 = vmul.f32 %v1523, 1.442695
        %v1535 = vpow.pop %v1534
        %v1536 = vmul.f32 %v1524, 1.442695
        %v1537 = vpow.pop %v1536
        %v1538 = vmul.f32 %v1525, 1.442695
        %v1539 = vpow.pop %v1538
        %v1540 = vmul.f32 %v1526, 1.442695
        %v1541 = vpow.pop %v1540
        %v1542 = vmul.f32 %v1527, 1.442695
        %v1543 = vpow.pop %v1542
        %v1544 = vsel %vm637, %v1529, 0.0
        %1545 = vadd.xlane.f32.xlu0 %v1544
        %v1546 = vpop.xlane.xlu0 %1545
        %v1547 = vsel %vm637, %v1531, 0.0
        %1548 = vadd.xlane.f32.xlu0 %v1547
        %v1549 = vpop.xlane.xlu0 %1548
        %v1550 = vsel %vm637, %v1533, 0.0
        %1551 = vadd.xlane.f32.xlu0 %v1550
        %v1552 = vpop.xlane.xlu0 %1551
        %v1553 = vsel %vm637, %v1535, 0.0
        %1554 = vadd.xlane.f32.xlu0 %v1553
        %v1555 = vpop.xlane.xlu0 %1554
        %v1556 = vsel %vm637, %v1537, 0.0
        %1557 = vadd.xlane.f32.xlu0 %v1556
        %v1558 = vpop.xlane.xlu0 %1557
        %v1559 = vsel %vm637, %v1539, 0.0
        %1560 = vadd.xlane.f32.xlu0 %v1559
        %v1561 = vpop.xlane.xlu0 %1560
        %v1562 = vsel %vm637, %v1541, 0.0
        %1563 = vadd.xlane.f32.xlu0 %v1562
        %v1564 = vpop.xlane.xlu0 %1563
        %v1565 = vsel %vm637, %v1543, 0.0
        %1566 = vadd.xlane.f32.xlu0 %v1565
        %v1567 = vpop.xlane.xlu0 %1566
        %v1568 = vrcp.pop %v1546
        %v1569 = vrcp.pop %v1549
        %v1570 = vrcp.pop %v1552
        %v1571 = vrcp.pop %v1555
        %v1572 = vrcp.pop %v1558
        %v1573 = vrcp.pop %v1561
        %v1574 = vrcp.pop %v1564
        %v1575 = vrcp.pop %v1567
        %v1576 = vmul.f32 %v1529, %v1568
        %v1577 = vmul.f32 %v1531, %v1569
        %v1578 = vmul.f32 %v1533, %v1570
        %v1579 = vmul.f32 %v1535, %v1571
        %v1580 = vmul.f32 %v1537, %v1572
        %v1581 = vmul.f32 %v1539, %v1573
        %v1582 = vmul.f32 %v1541, %v1574
        %v1583 = vmul.f32 %v1543, %v1575
        %v1584 = vpack.c.bf16 %v1577, %v1576
        %v1585 = vpack.c.bf16 %v1579, %v1578
        %v1586 = vpack.c.bf16 %v1581, %v1580
        %v1587 = vpack.c.bf16 %v1583, %v1582
        %1588 = vrot.lane.b32.xlu0 %v543, 32
        %v1589 = vpop.permute.xlu0 %1588
        %1590 = vrot.lane.b32.xlu0 %v544, 32
        %v1591 = vpop.permute.xlu0 %1590
        %1592 = vrot.lane.b32.xlu0 %v545, 32
        %v1593 = vpop.permute.xlu0 %1592
        %1594 = vrot.lane.b32.xlu0 %v546, 32
        %v1595 = vpop.permute.xlu0 %1594
        %v1601 = vsel %vm637, %v1584, 0
        %v1604 = vsel %vm637, %v1585, 0
        %v1607 = vsel %vm637, %v1586, 0
        %v1610 = vsel %vm637, %v1587, 0
        %1612 = vmatprep.subr.bf16.mxu0 0
        %1613 = vmatpush1.bf16.msra.mxu0 %v1589
        %1614 = vmatprep.subr.bf16.mxu0 0
        %1615 = vmatpush1.bf16.msra.mxu0 %v1591
        %1616 = vmatprep.subr.bf16.mxu0 0
        %1617 = vmatpush1.bf16.msra.mxu0 %v1593
        %1618 = vmatprep.subr.bf16.mxu0 0
        %1619 = vmatpush1.bf16.msra.mxu0 %v1595
        %1620 = vmatprep.subr.bf16.mxu0 0
        %1621 = vmatpush1.bf16.msra.mxu0 0
        %1622 = vmatprep.subr.bf16.mxu0 0
        %1623 = vmatpush1.bf16.msra.mxu0 0
        %1624 = vmatprep.subr.bf16.mxu0 0
        %1625 = vmatpush1.bf16.msra.mxu0 0
        %1626 = vmatprep.subr.bf16.mxu0 0
        %1627 = vmatpush1.bf16.msra.mxu0 0
        %1628 = vmatprep.subr.bf16.mxu0 0
        %1629 = vmatpush1.bf16.msra.mxu0 0
        %1630 = vmatprep.subr.bf16.mxu0 0
        %1631 = vmatpush1.bf16.msra.mxu0 0
        %1632 = vmatprep.subr.bf16.mxu0 0
        %1633 = vmatpush1.bf16.msra.mxu0 0
        %1634 = vmatprep.subr.bf16.mxu0 0
        %1635 = vmatpush1.bf16.msra.mxu0 0
        %1636 = vmatprep.subr.bf16.mxu0 0
        %1637 = vmatpush1.bf16.msra.mxu0 0
        %1638 = vmatprep.subr.bf16.mxu0 0
        %1639 = vmatpush1.bf16.msra.mxu0 0
        %1640 = vmatprep.subr.bf16.mxu0 0
        %1641 = vmatpush1.bf16.msra.mxu0 0
        %1642 = vmatprep.subr.bf16.mxu0 0
        %1643 = vmatpush1.bf16.msra.mxu0 0
        %1644 = vmatprep.mubr.bf16.mxu0 0
        %1645 = vmatmul.mubr.bf16.gmra.mrb[0].mxu0 %v1601
        %v1646 = vpop.f32.mrb[0].mxu0
        %v1647 = vadd.f32 0.0, %v1646
        %v1648 = vpop.f32.mrb[0].mxu0
        %v1649 = vpop.f32.mrb[0].mxu0
        %v1650 = vadd.f32 0.0, %v1649
        %v1651 = vpop.f32.mrb[0].mxu0
        %1652 = vmatprep.mubr.bf16.mxu0 0
        %1653 = vmatmul.mubr.bf16.gmra.mrb[0].mxu0 %v1604
        %v1654 = vpop.f32.mrb[0].mxu0
        %v1655 = vadd.f32 0.0, %v1654
        %v1656 = vpop.f32.mrb[0].mxu0
        %v1657 = vpop.f32.mrb[0].mxu0
        %v1658 = vadd.f32 0.0, %v1657
        %v1659 = vpop.f32.mrb[0].mxu0
        %1660 = vmatprep.mubr.bf16.mxu0 0
        %1661 = vmatmul.mubr.bf16.gmra.mrb[0].mxu0 %v1607
        %v1662 = vpop.f32.mrb[0].mxu0
        %v1663 = vadd.f32 0.0, %v1662
        %v1664 = vpop.f32.mrb[0].mxu0
        %v1665 = vpop.f32.mrb[0].mxu0
        %v1666 = vadd.f32 0.0, %v1665
        %v1667 = vpop.f32.mrb[0].mxu0
        %1668 = vmatprep.mubr.bf16.mxu0 0
        %1669 = vmatmul.mubr.bf16.gmra.mrb[0].mxu0 %v1610
        %v1670 = vpop.f32.mrb[0].mxu0
        %v1671 = vadd.f32 0.0, %v1670
        %v1672 = vpop.f32.mrb[0].mxu0
        %v1673 = vpop.f32.mrb[0].mxu0
        %v1674 = vadd.f32 0.0, %v1673
        %v1675 = vpop.f32.mrb[0].mxu0
        %1676 = vdwg.mxu0
        %1685 = vrot.lane.b32.xlu0 %v1075, 32
        %v1686 = vpop.permute.xlu0 %1685
        %1687 = vrot.lane.b32.xlu0 %v1078, 32
        %v1688 = vpop.permute.xlu0 %1687
        %1689 = vrot.lane.b32.xlu0 %v1083, 32
        %v1690 = vpop.permute.xlu0 %1689
        %1691 = vrot.lane.b32.xlu0 %v1086, 32
        %v1692 = vpop.permute.xlu0 %1691
        %1693 = vrot.lane.b32.xlu0 %v1091, 32
        %v1694 = vpop.permute.xlu0 %1693
        %1695 = vrot.lane.b32.xlu0 %v1094, 32
        %v1696 = vpop.permute.xlu0 %1695
        %1697 = vrot.lane.b32.xlu0 %v1099, 32
        %v1698 = vpop.permute.xlu0 %1697
        %1699 = vrot.lane.b32.xlu0 %v1102, 32
        %v1700 = vpop.permute.xlu0 %1699
        %1717 = vrot.lane.b32.xlu0 %v1361, 64
        %v1718 = vpop.permute.xlu0 %1717
        %1719 = vrot.lane.b32.xlu0 %v1364, 64
        %v1720 = vpop.permute.xlu0 %1719
        %1721 = vrot.lane.b32.xlu0 %v1369, 64
        %v1722 = vpop.permute.xlu0 %1721
        %1723 = vrot.lane.b32.xlu0 %v1372, 64
        %v1724 = vpop.permute.xlu0 %1723
        %1725 = vrot.lane.b32.xlu0 %v1377, 64
        %v1726 = vpop.permute.xlu0 %1725
        %1727 = vrot.lane.b32.xlu0 %v1380, 64
        %v1728 = vpop.permute.xlu0 %1727
        %1729 = vrot.lane.b32.xlu0 %v1385, 64
        %v1730 = vpop.permute.xlu0 %1729
        %1731 = vrot.lane.b32.xlu0 %v1388, 64
        %v1732 = vpop.permute.xlu0 %1731
        %1749 = vrot.lane.b32.xlu0 %v1647, 96
        %v1750 = vpop.permute.xlu0 %1749
        %1751 = vrot.lane.b32.xlu0 %v1650, 96
        %v1752 = vpop.permute.xlu0 %1751
        %1753 = vrot.lane.b32.xlu0 %v1655, 96
        %v1754 = vpop.permute.xlu0 %1753
        %1755 = vrot.lane.b32.xlu0 %v1658, 96
        %v1756 = vpop.permute.xlu0 %1755
        %1757 = vrot.lane.b32.xlu0 %v1663, 96
        %v1758 = vpop.permute.xlu0 %1757
        %1759 = vrot.lane.b32.xlu0 %v1666, 96
        %v1760 = vpop.permute.xlu0 %1759
        %1761 = vrot.lane.b32.xlu0 %v1671, 96
        %v1762 = vpop.permute.xlu0 %1761
        %1763 = vrot.lane.b32.xlu0 %v1674, 96
        %v1764 = vpop.permute.xlu0 %1763
        %v1773 = vsel %vm547, %v777, %v1686
        %v1774 = vsel %vm547, %v780, %v1688
        %v1775 = vsel %vm547, %v785, %v1690
        %v1776 = vsel %vm547, %v788, %v1692
        %v1777 = vsel %vm547, %v793, %v1694
        %v1778 = vsel %vm547, %v796, %v1696
        %v1779 = vsel %vm547, %v801, %v1698
        %v1780 = vsel %vm547, %v804, %v1700
        %v1781 = vsel %vm637, %v1773, %v1718
        %v1782 = vsel %vm637, %v1774, %v1720
        %v1783 = vsel %vm637, %v1775, %v1722
        %v1784 = vsel %vm637, %v1776, %v1724
        %v1785 = vsel %vm637, %v1777, %v1726
        %v1786 = vsel %vm637, %v1778, %v1728
        %v1787 = vsel %vm637, %v1779, %v1730
        %v1788 = vsel %vm637, %v1780, %v1732
        %vm1789 = vcmask 785408
        %v1790 = vsel %vm1789, %v1781, %v1750
        %v1791 = vsel %vm1789, %v1782, %v1752
        %v1792 = vsel %vm1789, %v1783, %v1754
        %v1793 = vsel %vm1789, %v1784, %v1756
        %v1794 = vsel %vm1789, %v1785, %v1758
        %v1795 = vsel %vm1789, %v1786, %v1760
        %v1796 = vsel %vm1789, %v1787, %v1762
        %v1797 = vsel %vm1789, %v1788, %v1764
        %v1798 = vpack.c.bf16 %v1791, %v1790
        %v1799 = vpack.c.bf16 %v1793, %v1792
        %v1800 = vpack.c.bf16 %v1795, %v1794
        %v1801 = vpack.c.bf16 %v1797, %v1796
        %v1802 = vld [vmem:[%s2] sm:$0xf]
        %v1803 = vld [vmem:[%s2 + $0x4] sm:$0xf]
        %v1804 = vld [vmem:[%s2 + $0x8] sm:$0xf]
        %v1805 = vld [vmem:[%s2 + $0xc] sm:$0xf]
        %v1806 = vld [vmem:[%s2 + $0x10] sm:$0xf]
        %v1807 = vld [vmem:[%s2 + $0x14] sm:$0xf]
        %v1808 = vld [vmem:[%s2 + $0x18] sm:$0xf]
        %v1809 = vld [vmem:[%s2 + $0x1c] sm:$0xf]
        %v1810 = vld [vmem:[%s2 + $0x20] sm:$0xf]
        %v1811 = vld [vmem:[%s2 + $0x24] sm:$0xf]
        %v1812 = vld [vmem:[%s2 + $0x28] sm:$0xf]
        %v1813 = vld [vmem:[%s2 + $0x2c] sm:$0xf]
        %v1814 = vld [vmem:[%s2 + $0x30] sm:$0xf]
        %v1815 = vld [vmem:[%s2 + $0x34] sm:$0xf]
        %v1816 = vld [vmem:[%s2 + $0x38] sm:$0xf]
        %v1817 = vld [vmem:[%s2 + $0x3c] sm:$0xf]
        %v1818 = vld [vmem:[%s3] sm:$0x1]
        %v1820 = vlaneseq
        %v1821 = vshrl.u32 %v1820, 7
        %v1822 = vsub.s32 0, %v1821
        %v1823 = vrot.slane %v1818, %v1822
        %v1841 = vunpack.c.l.b16 %v1802
        %v1842 = vunpack.c.l.b16 %v1803
        %v1843 = vunpack.c.l.b16 %v1804
        %v1844 = vunpack.c.l.b16 %v1805
        %v1845 = vunpack.c.l.b16 %v1806
        %v1846 = vunpack.c.l.b16 %v1807
        %v1847 = vunpack.c.l.b16 %v1808
        %v1848 = vunpack.c.l.b16 %v1809
        %v1849 = vunpack.c.l.b16 %v1810
        %v1850 = vunpack.c.l.b16 %v1811
        %v1851 = vunpack.c.l.b16 %v1812
        %v1852 = vunpack.c.l.b16 %v1813
        %v1853 = vunpack.c.l.b16 %v1814
        %v1854 = vunpack.c.l.b16 %v1815
        %v1855 = vunpack.c.l.b16 %v1816
        %v1856 = vunpack.c.l.b16 %v1817
        %v1857 = vpack.c.b16 %v1842, %v1841
        %v1858 = vpack.c.b16 %v1844, %v1843
        %v1859 = vpack.c.b16 %v1846, %v1845
        %v1860 = vpack.c.b16 %v1848, %v1847
        %v1861 = vpack.c.b16 %v1850, %v1849
        %v1862 = vpack.c.b16 %v1852, %v1851
        %v1863 = vpack.c.b16 %v1854, %v1853
        %v1864 = vpack.c.b16 %v1856, %v1855
        %1873 = vmatprep.subr.bf16.mxu0 0
        %1874 = vmatpush1.bf16.msra.mxu0 %v1857
        %1875 = vmatprep.subr.bf16.mxu0 0
        %1876 = vmatpush1.bf16.msra.mxu0 %v1858
        %1877 = vmatprep.subr.bf16.mxu0 0
        %1878 = vmatpush1.bf16.msra.mxu0 %v1859
        %1879 = vmatprep.subr.bf16.mxu0 0
        %1880 = vmatpush1.bf16.msra.mxu0 %v1860
        %1881 = vmatprep.subr.bf16.mxu0 0
        %1882 = vmatpush1.bf16.msra.mxu0 %v1861
        %1883 = vmatprep.subr.bf16.mxu0 0
        %1884 = vmatpush1.bf16.msra.mxu0 %v1862
        %1885 = vmatprep.subr.bf16.mxu0 0
        %1886 = vmatpush1.bf16.msra.mxu0 %v1863
        %1887 = vmatprep.subr.bf16.mxu0 0
        %1888 = vmatpush1.bf16.msra.mxu0 %v1864
        %1889 = vmatprep.subr.bf16.mxu0 0
        %1890 = vmatpush1.bf16.msra.mxu0 0
        %1891 = vmatprep.subr.bf16.mxu0 0
        %1892 = vmatpush1.bf16.msra.mxu0 0
        %1893 = vmatprep.subr.bf16.mxu0 0
        %1894 = vmatpush1.bf16.msra.mxu0 0
        %1895 = vmatprep.subr.bf16.mxu0 0
        %1896 = vmatpush1.bf16.msra.mxu0 0
        %1897 = vmatprep.subr.bf16.mxu0 0
        %1898 = vmatpush1.bf16.msra.mxu0 0
        %1899 = vmatprep.subr.bf16.mxu0 0
        %1900 = vmatpush1.bf16.msra.mxu0 0
        %1901 = vmatprep.subr.bf16.mxu0 0
        %1902 = vmatpush1.bf16.msra.mxu0 0
        %1903 = vmatprep.subr.bf16.mxu0 0
        %1904 = vmatpush1.bf16.msra.mxu0 0
        %1905 = vmatprep.mubr.bf16.mxu0 0
        %1906 = vmatmul.mubr.bf16.gmra.mrb[0].mxu0 %v1798
        %v1907 = vpop.f32.mrb[0].mxu0
        %v1908 = vadd.f32 %v1823, %v1907
        %v1909 = vpop.f32.mrb[0].mxu0
        %v1910 = vpop.f32.mrb[0].mxu0
        %v1911 = vadd.f32 %v1823, %v1910
        %v1912 = vpop.f32.mrb[0].mxu0
        %1913 = vmatprep.mubr.bf16.mxu0 0
        %1914 = vmatmul.mubr.bf16.gmra.mrb[0].mxu0 %v1799
        %v1915 = vpop.f32.mrb[0].mxu0
        %v1916 = vadd.f32 %v1823, %v1915
        %v1917 = vpop.f32.mrb[0].mxu0
        %v1918 = vpop.f32.mrb[0].mxu0
        %v1919 = vadd.f32 %v1823, %v1918
        %v1920 = vpop.f32.mrb[0].mxu0
        %1921 = vmatprep.mubr.bf16.mxu0 0
        %1922 = vmatmul.mubr.bf16.gmra.mrb[0].mxu0 %v1800
        %v1923 = vpop.f32.mrb[0].mxu0
        %v1924 = vadd.f32 %v1823, %v1923
        %v1925 = vpop.f32.mrb[0].mxu0
        %v1926 = vpop.f32.mrb[0].mxu0
        %v1927 = vadd.f32 %v1823, %v1926
        %v1928 = vpop.f32.mrb[0].mxu0
        %1929 = vmatprep.mubr.bf16.mxu0 0
        %1930 = vmatmul.mubr.bf16.gmra.mrb[0].mxu0 %v1801
        %v1931 = vpop.f32.mrb[0].mxu0
        %v1932 = vadd.f32 %v1823, %v1931
        %v1933 = vpop.f32.mrb[0].mxu0
        %v1934 = vpop.f32.mrb[0].mxu0
        %v1935 = vadd.f32 %v1823, %v1934
        %v1936 = vpop.f32.mrb[0].mxu0
        %1937 = vdwg.mxu0
        %1938 = vst [vmem:[%s190] sm:$0xff] %v1908
        %1939 = vst [vmem:[%s190 + $0x8] sm:$0xff] %v1911
        %1940 = vst [vmem:[%s190 + $0x10] sm:$0xff] %v1916
        %1941 = vst [vmem:[%s190 + $0x18] sm:$0xff] %v1919
        %1942 = vst [vmem:[%s190 + $0x20] sm:$0xff] %v1924
        %1943 = vst [vmem:[%s190 + $0x28] sm:$0xff] %v1927
        %1944 = vst [vmem:[%s190 + $0x30] sm:$0xff] %v1932
        %1945 = vst [vmem:[%s190 + $0x38] sm:$0xff] %v1935
        %s1946 = sand.u32 %s115, 1
        %s1947 = scalar_lea.sflag [#allocation3], %s1946
        %s1948 = sand.u32 %s115, 1
        %s1949 = smul.addr %s1948, 64
        %s1950 = scalar_lea.vmem [#allocation2], %s1949
        // Predicated region
        $region37: #{attention.1} parent=35 // pred_check
          %p1951 = pneg %p125
        $region38: #{attention.1} parent=35 // pred_check_branch
          %1953 = sbr.rel (%p1951) target = $region40
        $region39: #{attention.1} parent=35 // pred_region
          %s1955 = ssub.s32 1024, 1024
          %1956 = vsyncadd %s1947, %s1955
          %s1957 = smul.addr %s18, 8
          %s1958 = smul.addr %s1957, 128
          %s1959 = scalar_lea.hbm %s4, %s1958
          %s1960 = sshll.u32 %s1950, 4
          %s1961 = int_to_ptr.vmem [resolvable:$true] %s1960
          %1966 = dma.vmem_to_hbm [thread:$0]  %s1961, 1024, %s1959, %s1947, 128, 128, 8
        $region40: #{attention.1} parent=35 // pred_fallthru
          _
      $region36: #{attention.1} parent=5 // pred_fallthru
        _
      %p1967 = scmp.le.s32.totalorder 2, %s13
      // Predicated region
      $region41: #{attention.1} parent=5 // pred_check
        %p1968 = pneg %p1967
      $region42: #{attention.1} parent=5 // pred_check_branch
        %1970 = sbr.rel (%p1968) target = $region44
      $region43: #{attention.1} parent=5 // pred_region
        %s1971 = ssub.s32 %s13, 2
        // Predicated region
        $region45: #{attention.1} parent=43 // pred_check
          %p1972 = pneg %p131
        $region46: #{attention.1} parent=43 // pred_check_branch
          %1974 = sbr.rel (%p1972) target = $region48
        $region47: #{attention.1} parent=43 // pred_region
          %s1975 = sand.u32 %s116, 1
          %s1976 = scalar_lea.sflag [#allocation3], %s1975
          %s1977 = sand.u32 %s116, 1
          %s1978 = smul.addr %s1977, 64
          %s1979 = scalar_lea.vmem [#allocation2], %s1978
          %1980 = dma.done %s1976, 1024
        $region48: #{attention.1} parent=43 // pred_fallthru
          _
      $region44: #{attention.1} parent=5 // pred_fallthru
        _
    $region6: #{attention.1} parent=1 // loop_footer
      %s17 = sadd.s32 1, %s13
    $region7: #{attention.1} parent=1 // loop_footer_branch
      %12 = sbr.rel target = $region3
    $region8: #{attention.1} parent=1 // loop_exit
      _
    %1981 = vsyncpa [#allocation3], 1
    %s1982 = scalar_lea.sflag [#allocation3], 1
    %1983 = vsyncpa %s1982, 1

</llo_original>
